<compile_context>
chip_gen: v6e
topology: v6e:2x2x1
jax: 0.10.0
libtpu: 0.0.40
codegen_flags: <defaults>
</compile_context>

<pallas_src>
import jax
import jax.numpy as jnp
from jax.experimental import pallas as pl
from jax.experimental.pallas import tpu as pltpu


INPUT_DIM = 384
INTER_DIM = 64
LATENT_DIM = 10


def _autoencoder_kernel(x_ref,
                        w1_ref, b1_ref,
                        w23_ref, b23_ref,
                        w4_ref, b4_ref,
                        o_ref):
    x = x_ref[...]

    # encoder Linear(384->64); f32 accumulation, bias-add + ReLU fused on the f32 accumulator
    h = jnp.maximum(
        jnp.dot(x, w1_ref[...], preferred_element_type=jnp.float32)
        + b1_ref[...].astype(jnp.float32), 0.0)

    # folded 64 -> 10 -> 64 bottleneck (W2@W3); cast activation to the storage dtype so the
    # MXU pass stays single-pass bf16 x bf16 -> f32
    d = jnp.maximum(
        jnp.dot(h.astype(w23_ref.dtype), w23_ref[...], preferred_element_type=jnp.float32)
        + b23_ref[...].astype(jnp.float32), 0.0)

    # decoder Linear(64->384)
    out = (jnp.dot(d.astype(w4_ref.dtype), w4_ref[...], preferred_element_type=jnp.float32)
           + b4_ref[...].astype(jnp.float32))

    o_ref[...] = out.astype(o_ref.dtype)


def _pick_batch_tile(batch, requested):
    """Sublane-aligned tile that divides batch; prefer >= 4 grid steps (v7x: 2 TCs x >= 2)."""
    if batch % 8 != 0:
        return batch                      # tiny/ragged batch: single whole-batch step
    tile = min(requested, batch)
    if batch // 4 >= 8:
        tile = min(tile, batch // 4)      # >= 4 grid steps when the batch allows it
    tile = max((tile // 8) * 8, 8)        # multiple of 8 (sublane aligned)
    while batch % tile:
        tile -= 8                         # terminates: 8 always divides batch here
    return tile


def simple_autoencoder_forward(x, prepared, *, batch_tile=1024, io_buffering=None):
    """x: [B, INPUT_DIM] (bf16 recommended). prepared: dict from prepare_params().

    io_buffering: optional int; set to 3 on v7x if a profile shows exposed DMA at step
    boundaries (deeper pipelining of the x / out tiles).
    """
    B, D = x.shape
    assert D == INPUT_DIM

    w1, b1 = prepared["w1"], prepared["b1"]     # [384,64], [1,64]
    w23, b23 = prepared["w23"], prepared["b23"]  # [64,64],  [1,64]
    w4, b4 = prepared["w4"], prepared["b4"]     # [64,384], [1,384]

    batch_tile = _pick_batch_tile(B, batch_tile)
    grid = (B // batch_tile,)

    io_block = (batch_tile, INPUT_DIM)
    if io_buffering is None:
        x_spec = pl.BlockSpec(io_block, lambda i: (i, 0))
        o_spec = pl.BlockSpec(io_block, lambda i: (i, 0))
    else:
        x_spec = pl.BlockSpec(io_block, lambda i: (i, 0),
                              pipeline_mode=pl.Buffered(io_buffering))
        o_spec = pl.BlockSpec(io_block, lambda i: (i, 0),
                              pipeline_mode=pl.Buffered(io_buffering))

    # Whole-array, single-buffered VMEM residents: fetched once, reused every grid step.
    vmem_resident = pl.BlockSpec(memory_space=pltpu.MemorySpace.VMEM)

    itemsize = jnp.dtype(x.dtype).itemsize
    tile_bytes = batch_tile * INPUT_DIM * itemsize
    weight_bytes = sum(int(a.size) * jnp.dtype(a.dtype).itemsize
                       for a in (w1, b1, w23, b23, w4, b4))
    bufs = 2 if io_buffering is None else int(io_buffering)
    needed = 2 * bufs * tile_bytes + weight_bytes           # x + out pipelines + weights
    # Explicit scoped-VMEM limit: covers v5e's 16 MiB default at large tiles, stays well
    # under v7x's 64 MiB physical VMEM.
    vmem_limit = int(min(max(needed + (8 << 20), 32 << 20), 56 << 20))

    flops = 2 * B * (INPUT_DIM * INTER_DIM + INTER_DIM * INTER_DIM + INTER_DIM * INPUT_DIM)
    bytes_accessed = 2 * B * INPUT_DIM * itemsize + weight_bytes
    cost = pl.CostEstimate(flops=flops, transcendentals=0, bytes_accessed=bytes_accessed)

    return pl.pallas_call(
        _autoencoder_kernel,
        out_shape=jax.ShapeDtypeStruct((B, INPUT_DIM), x.dtype),
        grid_spec=pltpu.PrefetchScalarGridSpec(
            num_scalar_prefetch=0,
            grid=grid,
            in_specs=[
                x_spec,
                vmem_resident, vmem_resident,   # w1, b1
                vmem_resident, vmem_resident,   # w23, b23
                vmem_resident, vmem_resident,   # w4, b4
            ],
            out_specs=o_spec,
        ),
        compiler_params=pltpu.CompilerParams(
            dimension_semantics=("parallel",),
            vmem_limit_bytes=vmem_limit),
        cost_estimate=cost,
    )(x, w1, b1, w23, b23, w4, b4)


def init_params(key):
    """Deterministic f32 parameter init; weights stored transposed as [in, out]."""
    keys = jax.random.split(key, 8)

    def linear(kw, kb, fan_in, fan_out):
        # PyTorch nn.Linear default: U(-1/sqrt(fan_in), 1/sqrt(fan_in))
        bound = 1.0 / (fan_in ** 0.5)
        w = jax.random.uniform(kw, (fan_in, fan_out), jnp.float32, -bound, bound)
        b = jax.random.uniform(kb, (1, fan_out), jnp.float32, -bound, bound)
        return w, b

    w1, b1 = linear(keys[0], keys[1], INPUT_DIM, INTER_DIM)
    w2, b2 = linear(keys[2], keys[3], INTER_DIM, LATENT_DIM)
    w3, b3 = linear(keys[4], keys[5], LATENT_DIM, INTER_DIM)
    w4, b4 = linear(keys[6], keys[7], INTER_DIM, INPUT_DIM)
    return dict(w1=w1, b1=b1, w2=w2, b2=b2, w3=w3, b3=b3, w4=w4, b4=b4)


def prepare_params(params, dtype=jnp.bfloat16):
    """One-time prep: fold the 64->10->64 bottleneck in f32, then cast storage to `dtype`."""
    f32 = jnp.float32
    w2, b2 = params["w2"].astype(f32), params["b2"].astype(f32)
    w3, b3 = params["w3"].astype(f32), params["b3"].astype(f32)
    w23 = jnp.dot(w2, w3)                 # [64, 64]
    b23 = jnp.dot(b2, w3) + b3            # [1, 64]
    return dict(
        w1=params["w1"].astype(dtype), b1=params["b1"].astype(dtype),
        w23=w23.astype(dtype), b23=b23.astype(dtype),
        w4=params["w4"].astype(dtype), b4=params["b4"].astype(dtype))


def reference_forward(x, p):
    """Unfused, unfolded f32 JAX reference (eval-mode dropout = identity)."""
    h = jnp.maximum(x @ p["w1"] + p["b1"], 0.0)
    z = h @ p["w2"] + p["b2"]
    d = jnp.maximum(z @ p["w3"] + p["b3"], 0.0)
    return d @ p["w4"] + p["b4"]


def quantized_reference(x_q, prepared):
    """f32 reference mirroring the kernel's bf16 storage / f32 accumulation exactly."""
    f32 = jnp.float32
    xq = x_q.astype(f32)
    h = jnp.maximum(xq @ prepared["w1"].astype(f32) + prepared["b1"].astype(f32), 0.0)
    h = h.astype(prepared["w23"].dtype).astype(f32)
    d = jnp.maximum(h @ prepared["w23"].astype(f32) + prepared["b23"].astype(f32), 0.0)
    d = d.astype(prepared["w4"].dtype).astype(f32)
    return d @ prepared["w4"].astype(f32) + prepared["b4"].astype(f32)


if __name__ == "__main__":
    key = jax.random.PRNGKey(0)
    pkey, xkey = jax.random.split(key)

    params = init_params(pkey)
    prepared = prepare_params(params, dtype=jnp.bfloat16)

    # Demo batch: 512 rows; batch_tile (default 1024) clamps to 128 -> a 4-step grid, so
    # the pipeline overlaps and both v7x TensorCores get >= 2 steps each.
    batch = 512
    x_f32 = jax.random.normal(xkey, (batch, INPUT_DIM), jnp.float32)
    x = x_f32.astype(jnp.bfloat16)

    out = simple_autoencoder_forward(x, prepared)
    out = jax.block_until_ready(out)
    assert out.shape == (batch, INPUT_DIM)
    assert out.dtype == jnp.bfloat16

    out_f32 = out.astype(jnp.float32)

    # Tight check: same bf16-quantized params / activations, f32 accumulation -> only the
    # final bf16 store rounding differs.
    ref_q = quantized_reference(x, prepared)
    assert jnp.allclose(out_f32, ref_q, atol=2e-3, rtol=2e-2), \
        "mismatch vs bf16-quantized reference"

    # Loose check: full-f32, unfolded eval-mode reference (bf16 storage error budget).
    ref = reference_forward(x_f32, params)
    assert jnp.allclose(out_f32, ref, atol=5e-2, rtol=5e-2), \
        "mismatch vs f32 eval-mode reference"

    print("KERNEL_OK")
</pallas_src>

<mosaic_0001>
module attributes {stable_mosaic.version = 11 : i64} {
  func.func @_autoencoder_kernel(%arg0: i32, %arg1: memref<128x384xbf16, #tpu.memory_space<vmem>>, %arg2: memref<384x64xbf16, #tpu.memory_space<vmem>>, %arg3: memref<1x64xbf16, #tpu.memory_space<vmem>>, %arg4: memref<64x64xbf16, #tpu.memory_space<vmem>>, %arg5: memref<1x64xbf16, #tpu.memory_space<vmem>>, %arg6: memref<64x384xbf16, #tpu.memory_space<vmem>>, %arg7: memref<1x384xbf16, #tpu.memory_space<vmem>>, %arg8: memref<128x384xbf16, #tpu.memory_space<vmem>>) attributes {dimension_semantics = [#tpu.dimension_semantics<parallel>], iteration_bounds = array<i64: 4>, scalar_prefetch = 0 : i64, scratch_operands = 0 : i64, tpu.core_type = #tpu.core_type<tc>, window_params = [{transform_indices = @transform_0, window_bounds = array<i64: 128, 384>}, {pipeline_mode = #tpu.pipeline_mode<synchronous>, transform_indices = @transform_1, window_bounds = array<i64: 384, 64>}, {pipeline_mode = #tpu.pipeline_mode<synchronous>, transform_indices = @transform_2, window_bounds = array<i64: 1, 64>}, {pipeline_mode = #tpu.pipeline_mode<synchronous>, transform_indices = @transform_3, window_bounds = array<i64: 64, 64>}, {pipeline_mode = #tpu.pipeline_mode<synchronous>, transform_indices = @transform_4, window_bounds = array<i64: 1, 64>}, {pipeline_mode = #tpu.pipeline_mode<synchronous>, transform_indices = @transform_5, window_bounds = array<i64: 64, 384>}, {pipeline_mode = #tpu.pipeline_mode<synchronous>, transform_indices = @transform_6, window_bounds = array<i64: 1, 384>}, {transform_indices = @transform_7, window_bounds = array<i64: 128, 384>}]} {
    %c0 = arith.constant 0 : index
    %c0_0 = arith.constant 0 : index
    %0 = vector.load %arg1[%c0, %c0_0] : memref<128x384xbf16, #tpu.memory_space<vmem>>, vector<128x384xbf16>
    %c0_1 = arith.constant 0 : index
    %c0_2 = arith.constant 0 : index
    %1 = vector.load %arg2[%c0_1, %c0_2] : memref<384x64xbf16, #tpu.memory_space<vmem>>, vector<384x64xbf16>
    %cst = arith.constant dense<0.000000e+00> : vector<128x64xf32>
    %2 = tpu.matmul %0, %1, %cst {dimension_numbers = #tpu.dot_dimension_numbers<[1], [0], [0], [1], [0, 0, 1, 1], [], []>} : vector<128x384xbf16>, vector<384x64xbf16>, vector<128x64xf32> -> vector<128x64xf32>
    %c0_3 = arith.constant 0 : index
    %c0_4 = arith.constant 0 : index
    %3 = vector.load %arg3[%c0_3, %c0_4] : memref<1x64xbf16, #tpu.memory_space<vmem>>, vector<1x64xbf16>
    %4 = arith.extf %3 : vector<1x64xbf16> to vector<1x64xf32>
    %5 = vector.broadcast %4 : vector<1x64xf32> to vector<128x64xf32>
    %6 = arith.addf %2, %5 : vector<128x64xf32>
    %cst_5 = arith.constant 0.000000e+00 : f32
    %7 = vector.broadcast %cst_5 : f32 to vector<128x64xf32>
    %8 = arith.maximumf %6, %7 : vector<128x64xf32>
    %9 = arith.truncf %8 : vector<128x64xf32> to vector<128x64xbf16>
    %c0_6 = arith.constant 0 : index
    %c0_7 = arith.constant 0 : index
    %10 = vector.load %arg4[%c0_6, %c0_7] : memref<64x64xbf16, #tpu.memory_space<vmem>>, vector<64x64xbf16>
    %cst_8 = arith.constant dense<0.000000e+00> : vector<128x64xf32>
    %11 = tpu.matmul %9, %10, %cst_8 {dimension_numbers = #tpu.dot_dimension_numbers<[1], [0], [0], [1], [0, 0, 1, 1], [], []>} : vector<128x64xbf16>, vector<64x64xbf16>, vector<128x64xf32> -> vector<128x64xf32>
    %c0_9 = arith.constant 0 : index
    %c0_10 = arith.constant 0 : index
    %12 = vector.load %arg5[%c0_9, %c0_10] : memref<1x64xbf16, #tpu.memory_space<vmem>>, vector<1x64xbf16>
    %13 = arith.extf %12 : vector<1x64xbf16> to vector<1x64xf32>
    %14 = vector.broadcast %13 : vector<1x64xf32> to vector<128x64xf32>
    %15 = arith.addf %11, %14 : vector<128x64xf32>
    %cst_11 = arith.constant 0.000000e+00 : f32
    %16 = vector.broadcast %cst_11 : f32 to vector<128x64xf32>
    %17 = arith.maximumf %15, %16 : vector<128x64xf32>
    %18 = arith.truncf %17 : vector<128x64xf32> to vector<128x64xbf16>
    %c0_12 = arith.constant 0 : index
    %c0_13 = arith.constant 0 : index
    %19 = vector.load %arg6[%c0_12, %c0_13] : memref<64x384xbf16, #tpu.memory_space<vmem>>, vector<64x384xbf16>
    %cst_14 = arith.constant dense<0.000000e+00> : vector<128x384xf32>
    %20 = tpu.matmul %18, %19, %cst_14 {dimension_numbers = #tpu.dot_dimension_numbers<[1], [0], [0], [1], [0, 0, 1, 1], [], []>} : vector<128x64xbf16>, vector<64x384xbf16>, vector<128x384xf32> -> vector<128x384xf32>
    %c0_15 = arith.constant 0 : index
    %c0_16 = arith.constant 0 : index
    %21 = vector.load %arg7[%c0_15, %c0_16] : memref<1x384xbf16, #tpu.memory_space<vmem>>, vector<1x384xbf16>
    %22 = arith.extf %21 : vector<1x384xbf16> to vector<1x384xf32>
    %23 = vector.broadcast %22 : vector<1x384xf32> to vector<128x384xf32>
    %24 = arith.addf %20, %23 : vector<128x384xf32>
    %25 = arith.truncf %24 : vector<128x384xf32> to vector<128x384xbf16>
    %c0_17 = arith.constant 0 : index
    %c0_18 = arith.constant 0 : index
    %26 = vector.load %arg8[%c0_17, %c0_18] : memref<128x384xbf16, #tpu.memory_space<vmem>>, vector<128x384xbf16>
    tpu.vector_store %arg8[%c0_17, %c0_18], %25 {strides = array<i32>} : memref<128x384xbf16, #tpu.memory_space<vmem>>, vector<128x384xbf16>,
    return
  }
  func.func @transform_0(%arg0: i32) -> (i32, i32) {
    %c0_i32 = arith.constant 0 : i32
    %c0_i32_0 = arith.constant 0 : i32
    return %arg0, %c0_i32 : i32, i32
  }
  func.func @transform_1(%arg0: i32) -> (i32, i32) {
    %c0_i32 = arith.constant 0 : i32
    %c0_i32_0 = arith.constant 0 : i32
    %c0_i32_1 = arith.constant 0 : i32
    return %c0_i32, %c0_i32_0 : i32, i32
  }
  func.func @transform_2(%arg0: i32) -> (i32, i32) {
    %c0_i32 = arith.constant 0 : i32
    %c0_i32_0 = arith.constant 0 : i32
    %c0_i32_1 = arith.constant 0 : i32
    return %c0_i32, %c0_i32_0 : i32, i32
  }
  func.func @transform_3(%arg0: i32) -> (i32, i32) {
    %c0_i32 = arith.constant 0 : i32
    %c0_i32_0 = arith.constant 0 : i32
    %c0_i32_1 = arith.constant 0 : i32
    return %c0_i32, %c0_i32_0 : i32, i32
  }
  func.func @transform_4(%arg0: i32) -> (i32, i32) {
    %c0_i32 = arith.constant 0 : i32
    %c0_i32_0 = arith.constant 0 : i32
    %c0_i32_1 = arith.constant 0 : i32
    return %c0_i32, %c0_i32_0 : i32, i32
  }
  func.func @transform_5(%arg0: i32) -> (i32, i32) {
    %c0_i32 = arith.constant 0 : i32
    %c0_i32_0 = arith.constant 0 : i32
    %c0_i32_1 = arith.constant 0 : i32
    return %c0_i32, %c0_i32_0 : i32, i32
  }
  func.func @transform_6(%arg0: i32) -> (i32, i32) {
    %c0_i32 = arith.constant 0 : i32
    %c0_i32_0 = arith.constant 0 : i32
    %c0_i32_1 = arith.constant 0 : i32
    return %c0_i32, %c0_i32_0 : i32, i32
  }
  func.func @transform_7(%arg0: i32) -> (i32, i32) {
    %c0_i32 = arith.constant 0 : i32
    %c0_i32_0 = arith.constant 0 : i32
    return %arg0, %c0_i32 : i32, i32
  }
}

</mosaic_0001>

<llo_original>
// kernel: tpu_custom_call.1
$region0: #{tpu_custom_call.1}
  #allocation0 [shape = 'u32[]', space=smem, size = 0x4, offset = 0x4, fixed_abs, tag = 'smem constant byte address 0x4 - core index']
  #allocation1 [shape = 'u32[144,128]{1,0:T(1,128)}', space=vmem, size = 0x12000, scoped, tag = 'internal scratch']
  %s0 = inlined_call_operand.hbm [shape: bf16[512,384], index: 0, kind: input, shape index: {}]
  %s1 = inlined_call_operand.vmem [shape: bf16[384,64], index: 1, kind: input, shape index: {}]
  %s2 = inlined_call_operand.vmem [shape: bf16[1,64], index: 2, kind: input, shape index: {}]
  %s3 = inlined_call_operand.vmem [shape: bf16[64,64], index: 3, kind: input, shape index: {}]
  %s4 = inlined_call_operand.vmem [shape: bf16[1,64], index: 4, kind: input, shape index: {}]
  %s5 = inlined_call_operand.vmem [shape: bf16[64,384], index: 5, kind: input, shape index: {}]
  %s6 = inlined_call_operand.vmem [shape: bf16[1,384], index: 6, kind: input, shape index: {}]
  %s7 = inlined_call_operand.hbm [shape: bf16[512,384], index: 7, kind: output, shape index: {}]
  %s8 = sld [smem:[#allocation0]]
  $region65: #{tpu_custom_call.1} parent=0
    _
  %s10 = ssub.s32 1, %s8
  %s11 = scalar_select 0, %s10, %s8
  $region1: #{tpu_custom_call.1} parent=0
    #allocation2 [shape = 'u8[196608]{0}', space=vmem, size = 0x30000, scoped, tag = 'input window, operand 0']
    #allocation3 [shape = 's32[2]{0}', space=sflag, size = 0x8, scoped, tag = 'scoped memory for tpu_custom_call.1']
    #allocation4 [shape = 's32[2]{0}', space=sflag, size = 0x8, scoped, tag = 'scoped memory for tpu_custom_call.1']
    #allocation5 [shape = 'u8[196608]{0}', space=vmem, size = 0x30000, scoped, tag = 'output window, operand 0']
    %12 = vsyncpa [#allocation3], 0
    %s13 = scalar_lea.sflag [#allocation3], 1
    %14 = vsyncpa %s13, 0
    %15 = vsyncpa [#allocation4], 0
    %s16 = scalar_lea.sflag [#allocation4], 1
    %17 = vsyncpa %s16, 0
    loop: start=0, step=1, limit=6
    $region2: #{tpu_custom_call.1} parent=1 // loop_pre_header
      _
    $region3: #{tpu_custom_call.1} parent=1 // loop_header
      %s19 = sphi 0, %s23
      %p20 = scmp.ge.s32.totalorder %s19, 6
      %s29 = sphi 0, %s31
      %s32 = sphi 0, %s29
      %s33 = sphi 0, %s32
      %s49 = sphi 0, %s33
      %s53 = sphi 0, %s53
      %s55 = sphi 0, %s53
      %s56 = sphi 0, %s55
      %s70 = sphi 0, %s56
      %s74 = sphi 0, %s74
      %s76 = sphi 0, %s74
      %s77 = sphi 0, %s76
      %s91 = sphi 0, %s77
      %s95 = sphi 0, %s95
      %s97 = sphi 0, %s95
      %s98 = sphi 0, %s97
      %s112 = sphi 0, %s98
      %s116 = sphi 0, %s116
      %s118 = sphi 0, %s116
      %s119 = sphi 0, %s118
      %s133 = sphi 0, %s119
      %s137 = sphi 0, %s137
      %s139 = sphi 0, %s137
      %s140 = sphi 0, %s139
      %s154 = sphi 0, %s140
      %s158 = sphi 0, %s158
      %s160 = sphi 0, %s158
      %s161 = sphi 0, %s160
      %s175 = sphi 0, %s161
      %s181 = sphi 0, %s183
      %s184 = sphi 0, %s181
      %s185 = sphi 0, %s184
      %s201 = sphi 0, %s185
    $region4: #{tpu_custom_call.1} parent=1 // loop_header_branch
      %22 = sbr.rel (%p20) target = $region8
    $region5: #{tpu_custom_call.1} parent=1 // loop_body
      %s24 = ssub.s32 %s19, 1
      %s25 = ssub.s32 %s19, 2
      %s26 = sadd.s32 %s19, 1
      %s27 = ssub.s32 %s19, %s26
      %p28 = scmp.eq.s32.totalorder %s27, 0
      %s30 = sadd.s32 %s29, 1
      %s31 = scalar_select %p28, %s29, %s30
      %p34 = pneg %p28
      %p35 = scmp.eq.s32.totalorder %s19, 3
      %p36 = por %p34, %p35
      %p37 = scmp.ne.s32.totalorder %s29, %s32
      %p38 = scmp.eq.s32.totalorder %s19, 0
      %p39 = por %p37, %p38
      %p40 = scmp.ne.s32.totalorder %s29, %s32
      %p41 = scmp.eq.s32.totalorder %s24, 3
      %p42 = por %p40, %p41
      %p43 = scmp.ne.s32.totalorder %s32, %s33
      %p44 = scmp.eq.s32.totalorder %s24, 0
      %p45 = por %p43, %p44
      %p46 = scmp.ne.s32.totalorder %s32, %s33
      %p47 = scmp.eq.s32.totalorder %s25, 3
      %p48 = por %p46, %p47
      %p50 = scmp.ne.s32.totalorder %s33, %s49
      %p51 = scmp.eq.s32.totalorder %s25, 0
      %p52 = por %p50, %p51
      %s54 = sadd.s32 %s53, 1
      %p57 = scmp.eq.s32.totalorder %s19, 3
      %p58 = scmp.ne.s32.totalorder %s53, %s55
      %p59 = scmp.eq.s32.totalorder %s19, 0
      %p60 = por %p58, %p59
      %p61 = scmp.ne.s32.totalorder %s53, %s55
      %p62 = scmp.eq.s32.totalorder %s24, 3
      %p63 = por %p61, %p62
      %p64 = scmp.ne.s32.totalorder %s55, %s56
      %p65 = scmp.eq.s32.totalorder %s24, 0
      %p66 = por %p64, %p65
      %p67 = scmp.ne.s32.totalorder %s55, %s56
      %p68 = scmp.eq.s32.totalorder %s25, 3
      %p69 = por %p67, %p68
      %p71 = scmp.ne.s32.totalorder %s56, %s70
      %p72 = scmp.eq.s32.totalorder %s25, 0
      %p73 = por %p71, %p72
      %s75 = sadd.s32 %s74, 1
      %p78 = scmp.eq.s32.totalorder %s19, 3
      %p79 = scmp.ne.s32.totalorder %s74, %s76
      %p80 = scmp.eq.s32.totalorder %s19, 0
      %p81 = por %p79, %p80
      %p82 = scmp.ne.s32.totalorder %s74, %s76
      %p83 = scmp.eq.s32.totalorder %s24, 3
      %p84 = por %p82, %p83
      %p85 = scmp.ne.s32.totalorder %s76, %s77
      %p86 = scmp.eq.s32.totalorder %s24, 0
      %p87 = por %p85, %p86
      %p88 = scmp.ne.s32.totalorder %s76, %s77
      %p89 = scmp.eq.s32.totalorder %s25, 3
      %p90 = por %p88, %p89
      %p92 = scmp.ne.s32.totalorder %s77, %s91
      %p93 = scmp.eq.s32.totalorder %s25, 0
      %p94 = por %p92, %p93
      %s96 = sadd.s32 %s95, 1
      %p99 = scmp.eq.s32.totalorder %s19, 3
      %p100 = scmp.ne.s32.totalorder %s95, %s97
      %p101 = scmp.eq.s32.totalorder %s19, 0
      %p102 = por %p100, %p101
      %p103 = scmp.ne.s32.totalorder %s95, %s97
      %p104 = scmp.eq.s32.totalorder %s24, 3
      %p105 = por %p103, %p104
      %p106 = scmp.ne.s32.totalorder %s97, %s98
      %p107 = scmp.eq.s32.totalorder %s24, 0
      %p108 = por %p106, %p107
      %p109 = scmp.ne.s32.totalorder %s97, %s98
      %p110 = scmp.eq.s32.totalorder %s25, 3
      %p111 = por %p109, %p110
      %p113 = scmp.ne.s32.totalorder %s98, %s112
      %p114 = scmp.eq.s32.totalorder %s25, 0
      %p115 = por %p113, %p114
      %s117 = sadd.s32 %s116, 1
      %p120 = scmp.eq.s32.totalorder %s19, 3
      %p121 = scmp.ne.s32.totalorder %s116, %s118
      %p122 = scmp.eq.s32.totalorder %s19, 0
      %p123 = por %p121, %p122
      %p124 = scmp.ne.s32.totalorder %s116, %s118
      %p125 = scmp.eq.s32.totalorder %s24, 3
      %p126 = por %p124, %p125
      %p127 = scmp.ne.s32.totalorder %s118, %s119
      %p128 = scmp.eq.s32.totalorder %s24, 0
      %p129 = por %p127, %p128
      %p130 = scmp.ne.s32.totalorder %s118, %s119
      %p131 = scmp.eq.s32.totalorder %s25, 3
      %p132 = por %p130, %p131
      %p134 = scmp.ne.s32.totalorder %s119, %s133
      %p135 = scmp.eq.s32.totalorder %s25, 0
      %p136 = por %p134, %p135
      %s138 = sadd.s32 %s137, 1
      %p141 = scmp.eq.s32.totalorder %s19, 3
      %p142 = scmp.ne.s32.totalorder %s137, %s139
      %p143 = scmp.eq.s32.totalorder %s19, 0
      %p144 = por %p142, %p143
      %p145 = scmp.ne.s32.totalorder %s137, %s139
      %p146 = scmp.eq.s32.totalorder %s24, 3
      %p147 = por %p145, %p146
      %p148 = scmp.ne.s32.totalorder %s139, %s140
      %p149 = scmp.eq.s32.totalorder %s24, 0
      %p150 = por %p148, %p149
      %p151 = scmp.ne.s32.totalorder %s139, %s140
      %p152 = scmp.eq.s32.totalorder %s25, 3
      %p153 = por %p151, %p152
      %p155 = scmp.ne.s32.totalorder %s140, %s154
      %p156 = scmp.eq.s32.totalorder %s25, 0
      %p157 = por %p155, %p156
      %s159 = sadd.s32 %s158, 1
      %p162 = scmp.eq.s32.totalorder %s19, 3
      %p163 = scmp.ne.s32.totalorder %s158, %s160
      %p164 = scmp.eq.s32.totalorder %s19, 0
      %p165 = por %p163, %p164
      %p166 = scmp.ne.s32.totalorder %s158, %s160
      %p167 = scmp.eq.s32.totalorder %s24, 3
      %p168 = por %p166, %p167
      %p169 = scmp.ne.s32.totalorder %s160, %s161
      %p170 = scmp.eq.s32.totalorder %s24, 0
      %p171 = por %p169, %p170
      %p172 = scmp.ne.s32.totalorder %s160, %s161
      %p173 = scmp.eq.s32.totalorder %s25, 3
      %p174 = por %p172, %p173
      %p176 = scmp.ne.s32.totalorder %s161, %s175
      %p177 = scmp.eq.s32.totalorder %s25, 0
      %p178 = por %p176, %p177
      %s179 = ssub.s32 %s19, %s26
      %p180 = scmp.eq.s32.totalorder %s179, 0
      %s182 = sadd.s32 %s181, 1
      %s183 = scalar_select %p180, %s181, %s182
      %p186 = pneg %p180
      %p187 = scmp.eq.s32.totalorder %s19, 3
      %p188 = por %p186, %p187
      %p189 = scmp.ne.s32.totalorder %s181, %s184
      %p190 = scmp.eq.s32.totalorder %s19, 0
      %p191 = por %p189, %p190
      %p192 = scmp.ne.s32.totalorder %s181, %s184
      %p193 = scmp.eq.s32.totalorder %s24, 3
      %p194 = por %p192, %p193
      %p195 = scmp.ne.s32.totalorder %s184, %s185
      %p196 = scmp.eq.s32.totalorder %s24, 0
      %p197 = por %p195, %p196
      %p198 = scmp.ne.s32.totalorder %s184, %s185
      %p199 = scmp.eq.s32.totalorder %s25, 3
      %p200 = por %p198, %p199
      %p202 = scmp.ne.s32.totalorder %s185, %s201
      %p203 = scmp.eq.s32.totalorder %s25, 0
      %p204 = por %p202, %p203
      %p205 = scmp.le.s32.totalorder 1, %s19
      %p206 = scmp.lt.s32.totalorder %s19, 5
      %p207 = pnand %p205, %p206
      %p208 = pneg %p207
      // Predicated region
      $region9: #{tpu_custom_call.1} parent=5 // pred_check
        _
      $region10: #{tpu_custom_call.1} parent=5 // pred_check_branch
        %210 = sbr.rel (%p207) target = $region12
      $region11: #{tpu_custom_call.1} parent=5 // pred_region
        %s211 = ssub.s32 %s19, 1
        // Predicated region
        $region13: #{tpu_custom_call.1} parent=11 // pred_check
          %p212 = pneg %p66
        $region14: #{tpu_custom_call.1} parent=11 // pred_check_branch
          %214 = sbr.rel (%p212) target = $region16
        $region15: #{tpu_custom_call.1} parent=11 // pred_region
          _
        $region16: #{tpu_custom_call.1} parent=11 // pred_fallthru
          _
        // Predicated region
        $region17: #{tpu_custom_call.1} parent=11 // pred_check
          %p215 = pneg %p87
        $region18: #{tpu_custom_call.1} parent=11 // pred_check_branch
          %217 = sbr.rel (%p215) target = $region20
        $region19: #{tpu_custom_call.1} parent=11 // pred_region
          _
        $region20: #{tpu_custom_call.1} parent=11 // pred_fallthru
          _
        // Predicated region
        $region21: #{tpu_custom_call.1} parent=11 // pred_check
          %p218 = pneg %p108
        $region22: #{tpu_custom_call.1} parent=11 // pred_check_branch
          %220 = sbr.rel (%p218) target = $region24
        $region23: #{tpu_custom_call.1} parent=11 // pred_region
          _
        $region24: #{tpu_custom_call.1} parent=11 // pred_fallthru
          _
        // Predicated region
        $region25: #{tpu_custom_call.1} parent=11 // pred_check
          %p221 = pneg %p129
        $region26: #{tpu_custom_call.1} parent=11 // pred_check_branch
          %223 = sbr.rel (%p221) target = $region28
        $region27: #{tpu_custom_call.1} parent=11 // pred_region
          _
        $region28: #{tpu_custom_call.1} parent=11 // pred_fallthru
          _
        // Predicated region
        $region29: #{tpu_custom_call.1} parent=11 // pred_check
          %p224 = pneg %p150
        $region30: #{tpu_custom_call.1} parent=11 // pred_check_branch
          %226 = sbr.rel (%p224) target = $region32
        $region31: #{tpu_custom_call.1} parent=11 // pred_region
          _
        $region32: #{tpu_custom_call.1} parent=11 // pred_fallthru
          _
        // Predicated region
        $region33: #{tpu_custom_call.1} parent=11 // pred_check
          %p227 = pneg %p171
        $region34: #{tpu_custom_call.1} parent=11 // pred_check_branch
          %229 = sbr.rel (%p227) target = $region36
        $region35: #{tpu_custom_call.1} parent=11 // pred_region
          _
        $region36: #{tpu_custom_call.1} parent=11 // pred_fallthru
          _
      $region12: #{tpu_custom_call.1} parent=5 // pred_fallthru
        _
      %p230 = scmp.lt.s32.totalorder %s19, 4
      // Predicated region
      $region37: #{tpu_custom_call.1} parent=5 // pred_check
        %p231 = pneg %p230
      $region38: #{tpu_custom_call.1} parent=5 // pred_check_branch
        %233 = sbr.rel (%p231) target = $region40
      $region39: #{tpu_custom_call.1} parent=5 // pred_region
        // Predicated region
        $region41: #{tpu_custom_call.1} parent=39 // pred_check
          %p234 = pneg %p39
        $region42: #{tpu_custom_call.1} parent=39 // pred_check_branch
          %236 = sbr.rel (%p234) target = $region44
        $region43: #{tpu_custom_call.1} parent=39 // pred_region
          %s237 = sand.u32 %s29, 1
          %s238 = scalar_lea.sflag [#allocation3], %s237
          %s239 = sand.u32 %s29, 1
          %s240 = smul.addr %s239, 192
          %s241 = scalar_lea.vmem [#allocation2], %s240
          %s242 = smul.u32 16, %s19
          %s244 = ssub.s32 3072, 3072
          %245 = vsyncadd %s238, %s244
          %s246 = smul.addr %s242, 3
          %s247 = smul.addr %s246, 64
          %s248 = scalar_lea.hbm %s0, %s247
          %s249 = sshll.u32 %s241, 4
          %s250 = int_to_ptr.vmem [resolvable:$true] %s249
          %255 = dma.hbm_to_vmem [thread:$0]  %s248, 3072, %s250, %s238, 192, 192, 12
        $region44: #{tpu_custom_call.1} parent=39 // pred_fallthru
          _
      $region40: #{tpu_custom_call.1} parent=5 // pred_fallthru
        _
      %p256 = scmp.le.s32.totalorder 1, %s19
      %p257 = scmp.lt.s32.totalorder %s19, 5
      %p258 = pnand %p256, %p257
      %p259 = pneg %p258
      // Predicated region
      $region45: #{tpu_custom_call.1} parent=5 // pred_check
        _
      $region46: #{tpu_custom_call.1} parent=5 // pred_check_branch
        %261 = sbr.rel (%p258) target = $region48
      $region47: #{tpu_custom_call.1} parent=5 // pred_region
        %s262 = ssub.s32 %s19, 1
        %s263 = sand.u32 %s32, 1
        %s264 = scalar_lea.sflag [#allocation3], %s263
        %s265 = sand.u32 %s32, 1
        %s266 = smul.addr %s265, 192
        %s267 = scalar_lea.vmem [#allocation2], %s266
        // Predicated region
        $region49: #{tpu_custom_call.1} parent=47 // pred_check
          %p268 = pneg %p45
        $region50: #{tpu_custom_call.1} parent=47 // pred_check_branch
          %270 = sbr.rel (%p268) target = $region52
        $region51: #{tpu_custom_call.1} parent=47 // pred_region
          %271 = dma.done %s264, 3072
        $region52: #{tpu_custom_call.1} parent=47 // pred_fallthru
          _
        %s272 = sand.u32 %s32, 1
        %s273 = scalar_lea.sflag [#allocation3], %s272
        %s274 = sand.u32 %s32, 1
        %s275 = smul.addr %s274, 192
        %s276 = scalar_lea.vmem [#allocation2], %s275
        %p277 = pneg %p45
        %p278 = pneg %p42
        %p279 = pneg %p66
        %p280 = pneg %p63
        %p281 = pneg %p87
        %p282 = pneg %p84
        %p283 = pneg %p108
        %p284 = pneg %p105
        %p285 = pneg %p129
        %p286 = pneg %p126
        %p287 = pneg %p150
        %p288 = pneg %p147
        %p289 = pneg %p171
        %p290 = pneg %p168
        %p291 = pneg %p197
        %p292 = pneg %p194
        %s293 = sand.u32 %s184, 1
        %s294 = scalar_lea.sflag [#allocation4], %s293
        %s295 = sand.u32 %s184, 1
        %s296 = smul.addr %s295, 192
        %s297 = scalar_lea.vmem [#allocation5], %s296
        %s298 = smul.u32 16, %s24
        %s299 = smul.u32 16, %s24
        %v301 = vld [vmem:[%s267] sm:$0xff]
        %v302 = vld [vmem:[%s267 + $0x8] sm:$0xf]
        %v303 = vld [vmem:[%s267 + $0xc] sm:$0xff]
        %v304 = vld [vmem:[%s267 + $0x14] sm:$0xf]
        %v305 = vld [vmem:[%s267 + $0x18] sm:$0xff]
        %v306 = vld [vmem:[%s267 + $0x20] sm:$0xf]
        %v307 = vld [vmem:[%s267 + $0x24] sm:$0xff]
        %v308 = vld [vmem:[%s267 + $0x2c] sm:$0xf]
        %v309 = vld [vmem:[%s267 + $0x30] sm:$0xff]
        %v310 = vld [vmem:[%s267 + $0x38] sm:$0xf]
        %v311 = vld [vmem:[%s267 + $0x3c] sm:$0xff]
        %v312 = vld [vmem:[%s267 + $0x44] sm:$0xf]
        %v313 = vld [vmem:[%s267 + $0x48] sm:$0xff]
        %v314 = vld [vmem:[%s267 + $0x50] sm:$0xf]
        %v315 = vld [vmem:[%s267 + $0x54] sm:$0xff]
        %v316 = vld [vmem:[%s267 + $0x5c] sm:$0xf]
        %v317 = vld [vmem:[%s267 + $0x60] sm:$0xff]
        %v318 = vld [vmem:[%s267 + $0x68] sm:$0xf]
        %v319 = vld [vmem:[%s267 + $0x6c] sm:$0xff]
        %v320 = vld [vmem:[%s267 + $0x74] sm:$0xf]
        %v321 = vld [vmem:[%s267 + $0x78] sm:$0xff]
        %v322 = vld [vmem:[%s267 + $0x80] sm:$0xf]
        %v323 = vld [vmem:[%s267 + $0x84] sm:$0xff]
        %v324 = vld [vmem:[%s267 + $0x8c] sm:$0xf]
        %v325 = vld [vmem:[%s267 + $0x90] sm:$0xff]
        %v326 = vld [vmem:[%s267 + $0x98] sm:$0xf]
        %v327 = vld [vmem:[%s267 + $0x9c] sm:$0xff]
        %v328 = vld [vmem:[%s267 + $0xa4] sm:$0xf]
        %v329 = vld [vmem:[%s267 + $0xa8] sm:$0xff]
        %v330 = vld [vmem:[%s267 + $0xb0] sm:$0xf]
        %v331 = vld [vmem:[%s267 + $0xb4] sm:$0xff]
        %v332 = vld [vmem:[%s267 + $0xbc] sm:$0xf]
        %v333 = vld [vmem:[%s1] sm:$0xf]
        %v334 = vld [vmem:[%s1 + $0x4] sm:$0xf]
        %v335 = vld [vmem:[%s1 + $0x8] sm:$0xf]
        %v336 = vld [vmem:[%s1 + $0xc] sm:$0xf]
        %v337 = vld [vmem:[%s1 + $0x10] sm:$0xf]
        %v338 = vld [vmem:[%s1 + $0x14] sm:$0xf]
        %v339 = vld [vmem:[%s1 + $0x18] sm:$0xf]
        %v340 = vld [vmem:[%s1 + $0x1c] sm:$0xf]
        %v341 = vld [vmem:[%s1 + $0x20] sm:$0xf]
        %v342 = vld [vmem:[%s1 + $0x24] sm:$0xf]
        %v343 = vld [vmem:[%s1 + $0x28] sm:$0xf]
        %v344 = vld [vmem:[%s1 + $0x2c] sm:$0xf]
        %v345 = vld [vmem:[%s1 + $0x30] sm:$0xf]
        %v346 = vld [vmem:[%s1 + $0x34] sm:$0xf]
        %v347 = vld [vmem:[%s1 + $0x38] sm:$0xf]
        %v348 = vld [vmem:[%s1 + $0x3c] sm:$0xf]
        %v349 = vld [vmem:[%s1 + $0x40] sm:$0xf]
        %v350 = vld [vmem:[%s1 + $0x44] sm:$0xf]
        %v351 = vld [vmem:[%s1 + $0x48] sm:$0xf]
        %v352 = vld [vmem:[%s1 + $0x4c] sm:$0xf]
        %v353 = vld [vmem:[%s1 + $0x50] sm:$0xf]
        %v354 = vld [vmem:[%s1 + $0x54] sm:$0xf]
        %v355 = vld [vmem:[%s1 + $0x58] sm:$0xf]
        %v356 = vld [vmem:[%s1 + $0x5c] sm:$0xf]
        %v357 = vld [vmem:[%s1 + $0x60] sm:$0xf]
        %v358 = vld [vmem:[%s1 + $0x64] sm:$0xf]
        %v359 = vld [vmem:[%s1 + $0x68] sm:$0xf]
        %v360 = vld [vmem:[%s1 + $0x6c] sm:$0xf]
        %v361 = vld [vmem:[%s1 + $0x70] sm:$0xf]
        %v362 = vld [vmem:[%s1 + $0x74] sm:$0xf]
        %v363 = vld [vmem:[%s1 + $0x78] sm:$0xf]
        %v364 = vld [vmem:[%s1 + $0x7c] sm:$0xf]
        %v365 = vld [vmem:[%s1 + $0x80] sm:$0xf]
        %v366 = vld [vmem:[%s1 + $0x84] sm:$0xf]
        %v367 = vld [vmem:[%s1 + $0x88] sm:$0xf]
        %v368 = vld [vmem:[%s1 + $0x8c] sm:$0xf]
        %v369 = vld [vmem:[%s1 + $0x90] sm:$0xf]
        %v370 = vld [vmem:[%s1 + $0x94] sm:$0xf]
        %v371 = vld [vmem:[%s1 + $0x98] sm:$0xf]
        %v372 = vld [vmem:[%s1 + $0x9c] sm:$0xf]
        %v373 = vld [vmem:[%s1 + $0xa0] sm:$0xf]
        %v374 = vld [vmem:[%s1 + $0xa4] sm:$0xf]
        %v375 = vld [vmem:[%s1 + $0xa8] sm:$0xf]
        %v376 = vld [vmem:[%s1 + $0xac] sm:$0xf]
        %v377 = vld [vmem:[%s1 + $0xb0] sm:$0xf]
        %v378 = vld [vmem:[%s1 + $0xb4] sm:$0xf]
        %v379 = vld [vmem:[%s1 + $0xb8] sm:$0xf]
        %v380 = vld [vmem:[%s1 + $0xbc] sm:$0xf]
        %v381 = vld [vmem:[%s2] sm:$0x1]
        %v382 = vunpack.c.l.bf16 %v381
        %v383 = vlaneseq
        %v384 = vshrl.u32 %v383, 7
        %v385 = vsub.s32 0, %v384
        %v386 = vrot.slane %v382, %v385
        %v419 = vunpack.c.l.b16 %v301
        %v420 = vunpack.c.h.b16 %v301
        %v421 = vunpack.c.l.b16 %v302
        %v422 = vunpack.c.l.b16 %v303
        %v423 = vunpack.c.h.b16 %v303
        %v424 = vunpack.c.l.b16 %v304
        %v425 = vunpack.c.l.b16 %v305
        %v426 = vunpack.c.h.b16 %v305
        %v427 = vunpack.c.l.b16 %v306
        %v428 = vunpack.c.l.b16 %v307
        %v429 = vunpack.c.h.b16 %v307
        %v430 = vunpack.c.l.b16 %v308
        %v431 = vunpack.c.l.b16 %v309
        %v432 = vunpack.c.h.b16 %v309
        %v433 = vunpack.c.l.b16 %v310
        %v434 = vunpack.c.l.b16 %v311
        %v435 = vunpack.c.h.b16 %v311
        %v436 = vunpack.c.l.b16 %v312
        %v437 = vunpack.c.l.b16 %v313
        %v438 = vunpack.c.h.b16 %v313
        %v439 = vunpack.c.l.b16 %v314
        %v440 = vunpack.c.l.b16 %v315
        %v441 = vunpack.c.h.b16 %v315
        %v442 = vunpack.c.l.b16 %v316
        %v443 = vunpack.c.l.b16 %v317
        %v444 = vunpack.c.h.b16 %v317
        %v445 = vunpack.c.l.b16 %v318
        %v446 = vunpack.c.l.b16 %v319
        %v447 = vunpack.c.h.b16 %v319
        %v448 = vunpack.c.l.b16 %v320
        %v449 = vunpack.c.l.b16 %v321
        %v450 = vunpack.c.h.b16 %v321
        %v451 = vunpack.c.l.b16 %v322
        %v452 = vunpack.c.l.b16 %v323
        %v453 = vunpack.c.h.b16 %v323
        %v454 = vunpack.c.l.b16 %v324
        %v455 = vunpack.c.l.b16 %v325
        %v456 = vunpack.c.h.b16 %v325
        %v457 = vunpack.c.l.b16 %v326
        %v458 = vunpack.c.l.b16 %v327
        %v459 = vunpack.c.h.b16 %v327
        %v460 = vunpack.c.l.b16 %v328
        %v461 = vunpack.c.l.b16 %v329
        %v462 = vunpack.c.h.b16 %v329
        %v463 = vunpack.c.l.b16 %v330
        %v464 = vunpack.c.l.b16 %v331
        %v465 = vunpack.c.h.b16 %v331
        %v466 = vunpack.c.l.b16 %v332
        %v467 = vpack.c.b16 %v422, %v419
        %v468 = vpack.c.b16 %v423, %v420
        %v469 = vpack.c.b16 %v424, %v421
        %v470 = vpack.c.b16 %v428, %v425
        %v471 = vpack.c.b16 %v429, %v426
        %v472 = vpack.c.b16 %v430, %v427
        %v473 = vpack.c.b16 %v434, %v431
        %v474 = vpack.c.b16 %v435, %v432
        %v475 = vpack.c.b16 %v436, %v433
        %v476 = vpack.c.b16 %v440, %v437
        %v477 = vpack.c.b16 %v441, %v438
        %v478 = vpack.c.b16 %v442, %v439
        %v479 = vpack.c.b16 %v446, %v443
        %v480 = vpack.c.b16 %v447, %v444
        %v481 = vpack.c.b16 %v448, %v445
        %v482 = vpack.c.b16 %v452, %v449
        %v483 = vpack.c.b16 %v453, %v450
        %v484 = vpack.c.b16 %v454, %v451
        %v485 = vpack.c.b16 %v458, %v455
        %v486 = vpack.c.b16 %v459, %v456
        %v487 = vpack.c.b16 %v460, %v457
        %v488 = vpack.c.b16 %v464, %v461
        %v489 = vpack.c.b16 %v465, %v462
        %v490 = vpack.c.b16 %v466, %v463
        %v563 = vunpack.c.l.b16 %v333
        %v564 = vunpack.c.l.b16 %v334
        %v565 = vunpack.c.l.b16 %v335
        %v566 = vunpack.c.l.b16 %v336
        %v567 = vunpack.c.l.b16 %v337
        %v568 = vunpack.c.l.b16 %v338
        %v569 = vunpack.c.l.b16 %v339
        %v570 = vunpack.c.l.b16 %v340
        %v571 = vunpack.c.l.b16 %v341
        %v572 = vunpack.c.l.b16 %v342
        %v573 = vunpack.c.l.b16 %v343
        %v574 = vunpack.c.l.b16 %v344
        %v575 = vunpack.c.l.b16 %v345
        %v576 = vunpack.c.l.b16 %v346
        %v577 = vunpack.c.l.b16 %v347
        %v578 = vunpack.c.l.b16 %v348
        %v579 = vunpack.c.l.b16 %v349
        %v580 = vunpack.c.l.b16 %v350
        %v581 = vunpack.c.l.b16 %v351
        %v582 = vunpack.c.l.b16 %v352
        %v583 = vunpack.c.l.b16 %v353
        %v584 = vunpack.c.l.b16 %v354
        %v585 = vunpack.c.l.b16 %v355
        %v586 = vunpack.c.l.b16 %v356
        %v587 = vunpack.c.l.b16 %v357
        %v588 = vunpack.c.l.b16 %v358
        %v589 = vunpack.c.l.b16 %v359
        %v590 = vunpack.c.l.b16 %v360
        %v591 = vunpack.c.l.b16 %v361
        %v592 = vunpack.c.l.b16 %v362
        %v593 = vunpack.c.l.b16 %v363
        %v594 = vunpack.c.l.b16 %v364
        %v595 = vunpack.c.l.b16 %v365
        %v596 = vunpack.c.l.b16 %v366
        %v597 = vunpack.c.l.b16 %v367
        %v598 = vunpack.c.l.b16 %v368
        %v599 = vunpack.c.l.b16 %v369
        %v600 = vunpack.c.l.b16 %v370
        %v601 = vunpack.c.l.b16 %v371
        %v602 = vunpack.c.l.b16 %v372
        %v603 = vunpack.c.l.b16 %v373
        %v604 = vunpack.c.l.b16 %v374
        %v605 = vunpack.c.l.b16 %v375
        %v606 = vunpack.c.l.b16 %v376
        %v607 = vunpack.c.l.b16 %v377
        %v608 = vunpack.c.l.b16 %v378
        %v609 = vunpack.c.l.b16 %v379
        %v610 = vunpack.c.l.b16 %v380
        %v611 = vpack.c.b16 %v564, %v563
        %v612 = vpack.c.b16 %v566, %v565
        %v613 = vpack.c.b16 %v568, %v567
        %v614 = vpack.c.b16 %v570, %v569
        %v615 = vpack.c.b16 %v572, %v571
        %v616 = vpack.c.b16 %v574, %v573
        %v617 = vpack.c.b16 %v576, %v575
        %v618 = vpack.c.b16 %v578, %v577
        %v619 = vpack.c.b16 %v580, %v579
        %v620 = vpack.c.b16 %v582, %v581
        %v621 = vpack.c.b16 %v584, %v583
        %v622 = vpack.c.b16 %v586, %v585
        %v623 = vpack.c.b16 %v588, %v587
        %v624 = vpack.c.b16 %v590, %v589
        %v625 = vpack.c.b16 %v592, %v591
        %v626 = vpack.c.b16 %v594, %v593
        %v627 = vpack.c.b16 %v596, %v595
        %v628 = vpack.c.b16 %v598, %v597
        %v629 = vpack.c.b16 %v600, %v599
        %v630 = vpack.c.b16 %v602, %v601
        %v631 = vpack.c.b16 %v604, %v603
        %v632 = vpack.c.b16 %v606, %v605
        %v633 = vpack.c.b16 %v608, %v607
        %v634 = vpack.c.b16 %v610, %v609
        %659 = vmatprep.subr.bf16.mxu0 0
        %660 = vmatpush1.bf16.msra.mxu0 %v618
        %661 = vmatprep.subr.bf16.mxu0 0
        %662 = vmatpush1.bf16.msra.mxu0 %v617
        %663 = vmatprep.subr.bf16.mxu0 0
        %664 = vmatpush1.bf16.msra.mxu0 %v616
        %665 = vmatprep.subr.bf16.mxu0 0
        %666 = vmatpush1.bf16.msra.mxu0 %v615
        %667 = vmatprep.subr.bf16.mxu0 0
        %668 = vmatpush1.bf16.msra.mxu0 %v614
        %669 = vmatprep.subr.bf16.mxu0 0
        %670 = vmatpush1.bf16.msra.mxu0 %v613
        %671 = vmatprep.subr.bf16.mxu0 0
        %672 = vmatpush1.bf16.msra.mxu0 %v612
        %673 = vmatprep.subr.bf16.mxu0 0
        %674 = vmatpush1.bf16.msra.mxu0 %v611
        %675 = vmatprep.subr.bf16.mxu0 0
        %676 = vmatpush2.bf16.msra.mxu0 %v626
        %677 = vmatprep.subr.bf16.mxu0 0
        %678 = vmatpush2.bf16.msra.mxu0 %v625
        %679 = vmatprep.subr.bf16.mxu0 0
        %680 = vmatpush2.bf16.msra.mxu0 %v624
        %681 = vmatprep.subr.bf16.mxu0 0
        %682 = vmatpush2.bf16.msra.mxu0 %v623
        %683 = vmatprep.subr.bf16.mxu0 0
        %684 = vmatpush2.bf16.msra.mxu0 %v622
        %685 = vmatprep.subr.bf16.mxu0 0
        %686 = vmatpush2.bf16.msra.mxu0 %v621
        %687 = vmatprep.subr.bf16.mxu0 0
        %688 = vmatpush2.bf16.msra.mxu0 %v620
        %689 = vmatprep.subr.bf16.mxu0 0
        %690 = vmatpush2.bf16.msra.mxu0 %v619
        %691 = vmatprep.mubr.bf16.mxu0 %v468
        %692 = vmatmul.mubr.bf16.gmra.mxu0 %v467
        %v693 = vpop.f32.mrf.mxu0
        %v694 = vadd.f32 %v386, %v693
        %v695 = vpop.f32.mrf.mxu0
        %v696 = vpop.f32.mrf.mxu0
        %v697 = vadd.f32 %v386, %v696
        %v698 = vpop.f32.mrf.mxu0
        %699 = vmatprep.mubr.bf16.mxu0 %v471
        %700 = vmatmul.mubr.bf16.gmra.mxu0 %v470
        %v701 = vpop.f32.mrf.mxu0
        %v702 = vadd.f32 %v386, %v701
        %v703 = vpop.f32.mrf.mxu0
        %v704 = vpop.f32.mrf.mxu0
        %v705 = vadd.f32 %v386, %v704
        %v706 = vpop.f32.mrf.mxu0
        %707 = vmatprep.mubr.bf16.mxu0 %v474
        %708 = vmatmul.mubr.bf16.gmra.mxu0 %v473
        %v709 = vpop.f32.mrf.mxu0
        %v710 = vadd.f32 %v386, %v709
        %v711 = vpop.f32.mrf.mxu0
        %v712 = vpop.f32.mrf.mxu0
        %v713 = vadd.f32 %v386, %v712
        %v714 = vpop.f32.mrf.mxu0
        %715 = vmatprep.mubr.bf16.mxu0 %v477
        %716 = vmatmul.mubr.bf16.gmra.mxu0 %v476
        %v717 = vpop.f32.mrf.mxu0
        %v718 = vadd.f32 %v386, %v717
        %v719 = vpop.f32.mrf.mxu0
        %v720 = vpop.f32.mrf.mxu0
        %v721 = vadd.f32 %v386, %v720
        %v722 = vpop.f32.mrf.mxu0
        %723 = vmatprep.mubr.bf16.mxu0 %v480
        %724 = vmatmul.mubr.bf16.gmra.mxu0 %v479
        %v725 = vpop.f32.mrf.mxu0
        %v726 = vadd.f32 %v386, %v725
        %v727 = vpop.f32.mrf.mxu0
        %v728 = vpop.f32.mrf.mxu0
        %v729 = vadd.f32 %v386, %v728
        %v730 = vpop.f32.mrf.mxu0
        %731 = vmatprep.mubr.bf16.mxu0 %v483
        %732 = vmatmul.mubr.bf16.gmra.mxu0 %v482
        %v733 = vpop.f32.mrf.mxu0
        %v734 = vadd.f32 %v386, %v733
        %v735 = vpop.f32.mrf.mxu0
        %v736 = vpop.f32.mrf.mxu0
        %v737 = vadd.f32 %v386, %v736
        %v738 = vpop.f32.mrf.mxu0
        %739 = vmatprep.mubr.bf16.mxu0 %v486
        %740 = vmatmul.mubr.bf16.gmra.mxu0 %v485
        %v741 = vpop.f32.mrf.mxu0
        %v742 = vadd.f32 %v386, %v741
        %v743 = vpop.f32.mrf.mxu0
        %v744 = vpop.f32.mrf.mxu0
        %v745 = vadd.f32 %v386, %v744
        %v746 = vpop.f32.mrf.mxu0
        %747 = vmatprep.mubr.bf16.mxu0 %v489
        %748 = vmatmul.mubr.bf16.gmra.mxu0 %v488
        %v749 = vpop.f32.mrf.mxu0
        %v750 = vadd.f32 %v386, %v749
        %v751 = vpop.f32.mrf.mxu0
        %v752 = vpop.f32.mrf.mxu0
        %v753 = vadd.f32 %v386, %v752
        %v754 = vpop.f32.mrf.mxu0
        %755 = vdwg.mxu0
        %756 = vmatprep.subr.bf16.mxu0 0
        %757 = vmatpush1.bf16.msra.mxu0 %v634
        %758 = vmatprep.subr.bf16.mxu0 0
        %759 = vmatpush1.bf16.msra.mxu0 %v633
        %760 = vmatprep.subr.bf16.mxu0 0
        %761 = vmatpush1.bf16.msra.mxu0 %v632
        %762 = vmatprep.subr.bf16.mxu0 0
        %763 = vmatpush1.bf16.msra.mxu0 %v631
        %764 = vmatprep.subr.bf16.mxu0 0
        %765 = vmatpush1.bf16.msra.mxu0 %v630
        %766 = vmatprep.subr.bf16.mxu0 0
        %767 = vmatpush1.bf16.msra.mxu0 %v629
        %768 = vmatprep.subr.bf16.mxu0 0
        %769 = vmatpush1.bf16.msra.mxu0 %v628
        %770 = vmatprep.subr.bf16.mxu0 0
        %771 = vmatpush1.bf16.msra.mxu0 %v627
        %772 = vmatprep.subr.bf16.mxu0 0
        %773 = vmatpush2.bf16.msra.mxu0 0
        %774 = vmatprep.subr.bf16.mxu0 0
        %775 = vmatpush2.bf16.msra.mxu0 0
        %776 = vmatprep.subr.bf16.mxu0 0
        %777 = vmatpush2.bf16.msra.mxu0 0
        %778 = vmatprep.subr.bf16.mxu0 0
        %779 = vmatpush2.bf16.msra.mxu0 0
        %780 = vmatprep.subr.bf16.mxu0 0
        %781 = vmatpush2.bf16.msra.mxu0 0
        %782 = vmatprep.subr.bf16.mxu0 0
        %783 = vmatpush2.bf16.msra.mxu0 0
        %784 = vmatprep.subr.bf16.mxu0 0
        %785 = vmatpush2.bf16.msra.mxu0 0
        %786 = vmatprep.subr.bf16.mxu0 0
        %787 = vmatpush2.bf16.msra.mxu0 0
        %788 = vmatprep.mubr.bf16.mxu0 0
        %789 = vmatmul.mubr.bf16.gmra.mxu0 %v469
        %v790 = vpop.f32.mrf.mxu0
        %v791 = vadd.f32 %v694, %v790
        %v792 = vpop.f32.mrf.mxu0
        %v793 = vpop.f32.mrf.mxu0
        %v794 = vadd.f32 %v697, %v793
        %v795 = vpop.f32.mrf.mxu0
        %796 = vmatprep.mubr.bf16.mxu0 0
        %797 = vmatmul.mubr.bf16.gmra.mxu0 %v472
        %v798 = vpop.f32.mrf.mxu0
        %v799 = vadd.f32 %v702, %v798
        %v800 = vpop.f32.mrf.mxu0
        %v801 = vpop.f32.mrf.mxu0
        %v802 = vadd.f32 %v705, %v801
        %v803 = vpop.f32.mrf.mxu0
        %804 = vmatprep.mubr.bf16.mxu0 0
        %805 = vmatmul.mubr.bf16.gmra.mxu0 %v475
        %v806 = vpop.f32.mrf.mxu0
        %v807 = vadd.f32 %v710, %v806
        %v808 = vpop.f32.mrf.mxu0
        %v809 = vpop.f32.mrf.mxu0
        %v810 = vadd.f32 %v713, %v809
        %v811 = vpop.f32.mrf.mxu0
        %812 = vmatprep.mubr.bf16.mxu0 0
        %813 = vmatmul.mubr.bf16.gmra.mxu0 %v478
        %v814 = vpop.f32.mrf.mxu0
        %v815 = vadd.f32 %v718, %v814
        %v816 = vpop.f32.mrf.mxu0
        %v817 = vpop.f32.mrf.mxu0
        %v818 = vadd.f32 %v721, %v817
        %v819 = vpop.f32.mrf.mxu0
        %820 = vmatprep.mubr.bf16.mxu0 0
        %821 = vmatmul.mubr.bf16.gmra.mxu0 %v481
        %v822 = vpop.f32.mrf.mxu0
        %v823 = vadd.f32 %v726, %v822
        %v824 = vpop.f32.mrf.mxu0
        %v825 = vpop.f32.mrf.mxu0
        %v826 = vadd.f32 %v729, %v825
        %v827 = vpop.f32.mrf.mxu0
        %828 = vmatprep.mubr.bf16.mxu0 0
        %829 = vmatmul.mubr.bf16.gmra.mxu0 %v484
        %v830 = vpop.f32.mrf.mxu0
        %v831 = vadd.f32 %v734, %v830
        %v832 = vpop.f32.mrf.mxu0
        %v833 = vpop.f32.mrf.mxu0
        %v834 = vadd.f32 %v737, %v833
        %v835 = vpop.f32.mrf.mxu0
        %836 = vmatprep.mubr.bf16.mxu0 0
        %837 = vmatmul.mubr.bf16.gmra.mxu0 %v487
        %v838 = vpop.f32.mrf.mxu0
        %v839 = vadd.f32 %v742, %v838
        %v840 = vpop.f32.mrf.mxu0
        %v841 = vpop.f32.mrf.mxu0
        %v842 = vadd.f32 %v745, %v841
        %v843 = vpop.f32.mrf.mxu0
        %844 = vmatprep.mubr.bf16.mxu0 0
        %845 = vmatmul.mubr.bf16.gmra.mxu0 %v490
        %v846 = vpop.f32.mrf.mxu0
        %v847 = vadd.f32 %v750, %v846
        %v848 = vpop.f32.mrf.mxu0
        %v849 = vpop.f32.mrf.mxu0
        %v850 = vadd.f32 %v753, %v849
        %v851 = vpop.f32.mrf.mxu0
        %852 = vdwg.mxu0
        %v853 = vmax.f32 %v791, 0.0
        %v854 = vmax.f32 %v794, 0.0
        %v855 = vmax.f32 %v799, 0.0
        %v856 = vmax.f32 %v802, 0.0
        %v857 = vmax.f32 %v807, 0.0
        %v858 = vmax.f32 %v810, 0.0
        %v859 = vmax.f32 %v815, 0.0
        %v860 = vmax.f32 %v818, 0.0
        %v861 = vmax.f32 %v823, 0.0
        %v862 = vmax.f32 %v826, 0.0
        %v863 = vmax.f32 %v831, 0.0
        %v864 = vmax.f32 %v834, 0.0
        %v865 = vmax.f32 %v839, 0.0
        %v866 = vmax.f32 %v842, 0.0
        %v867 = vmax.f32 %v847, 0.0
        %v868 = vmax.f32 %v850, 0.0
        %v869 = vpack.c.bf16 %v854, %v853
        %v870 = vpack.c.bf16 %v856, %v855
        %v871 = vpack.c.bf16 %v858, %v857
        %v872 = vpack.c.bf16 %v860, %v859
        %v873 = vpack.c.bf16 %v862, %v861
        %v874 = vpack.c.bf16 %v864, %v863
        %v875 = vpack.c.bf16 %v866, %v865
        %v876 = vpack.c.bf16 %v868, %v867
        %v877 = vld [vmem:[%s3] sm:$0xf]
        %v878 = vld [vmem:[%s3 + $0x4] sm:$0xf]
        %v879 = vld [vmem:[%s3 + $0x8] sm:$0xf]
        %v880 = vld [vmem:[%s3 + $0xc] sm:$0xf]
        %v881 = vld [vmem:[%s3 + $0x10] sm:$0xf]
        %v882 = vld [vmem:[%s3 + $0x14] sm:$0xf]
        %v883 = vld [vmem:[%s3 + $0x18] sm:$0xf]
        %v884 = vld [vmem:[%s3 + $0x1c] sm:$0xf]
        %v885 = vld [vmem:[%s4] sm:$0x1]
        %v886 = vunpack.c.l.bf16 %v885
        %v887 = vlaneseq
        %v888 = vshrl.u32 %v887, 7
        %v889 = vsub.s32 0, %v888
        %v890 = vrot.slane %v886, %v889
        %v899 = vunpack.c.l.b16 %v877
        %v900 = vunpack.c.l.b16 %v878
        %v901 = vunpack.c.l.b16 %v879
        %v902 = vunpack.c.l.b16 %v880
        %v903 = vunpack.c.l.b16 %v881
        %v904 = vunpack.c.l.b16 %v882
        %v905 = vunpack.c.l.b16 %v883
        %v906 = vunpack.c.l.b16 %v884
        %v907 = vpack.c.b16 %v900, %v899
        %v908 = vpack.c.b16 %v902, %v901
        %v909 = vpack.c.b16 %v904, %v903
        %v910 = vpack.c.b16 %v906, %v905
        %vm915 = vcmask 523264
        %v917 = vsel %vm915, %v869, 0
        %v920 = vsel %vm915, %v870, 0
        %v923 = vsel %vm915, %v871, 0
        %v926 = vsel %vm915, %v872, 0
        %v929 = vsel %vm915, %v873, 0
        %v932 = vsel %vm915, %v874, 0
        %v935 = vsel %vm915, %v875, 0
        %v938 = vsel %vm915, %v876, 0
        %940 = vmatprep.subr.bf16.mxu0 0
        %941 = vmatpush1.bf16.msra.mxu0 0
        %942 = vmatprep.subr.bf16.mxu0 0
        %943 = vmatpush1.bf16.msra.mxu0 0
        %944 = vmatprep.subr.bf16.mxu0 0
        %945 = vmatpush1.bf16.msra.mxu0 0
        %946 = vmatprep.subr.bf16.mxu0 0
        %947 = vmatpush1.bf16.msra.mxu0 0
        %948 = vmatprep.subr.bf16.mxu0 0
        %949 = vmatpush1.bf16.msra.mxu0 %v910
        %950 = vmatprep.subr.bf16.mxu0 0
        %951 = vmatpush1.bf16.msra.mxu0 %v909
        %952 = vmatprep.subr.bf16.mxu0 0
        %953 = vmatpush1.bf16.msra.mxu0 %v908
        %954 = vmatprep.subr.bf16.mxu0 0
        %955 = vmatpush1.bf16.msra.mxu0 %v907
        %956 = vmatprep.subr.bf16.mxu0 0
        %957 = vmatpush2.bf16.msra.mxu0 0
        %958 = vmatprep.subr.bf16.mxu0 0
        %959 = vmatpush2.bf16.msra.mxu0 0
        %960 = vmatprep.subr.bf16.mxu0 0
        %961 = vmatpush2.bf16.msra.mxu0 0
        %962 = vmatprep.subr.bf16.mxu0 0
        %963 = vmatpush2.bf16.msra.mxu0 0
        %964 = vmatprep.subr.bf16.mxu0 0
        %965 = vmatpush2.bf16.msra.mxu0 0
        %966 = vmatprep.subr.bf16.mxu0 0
        %967 = vmatpush2.bf16.msra.mxu0 0
        %968 = vmatprep.subr.bf16.mxu0 0
        %969 = vmatpush2.bf16.msra.mxu0 0
        %970 = vmatprep.subr.bf16.mxu0 0
        %971 = vmatpush2.bf16.msra.mxu0 0
        %972 = vmatprep.mubr.bf16.mxu0 0
        %973 = vmatmul.mubr.bf16.gmra.mxu0 %v917
        %v974 = vpop.f32.mrf.mxu0
        %v975 = vadd.f32 %v890, %v974
        %v976 = vpop.f32.mrf.mxu0
        %v977 = vpop.f32.mrf.mxu0
        %v978 = vadd.f32 %v890, %v977
        %v979 = vpop.f32.mrf.mxu0
        %980 = vmatprep.mubr.bf16.mxu0 0
        %981 = vmatmul.mubr.bf16.gmra.mxu0 %v920
        %v982 = vpop.f32.mrf.mxu0
        %v983 = vadd.f32 %v890, %v982
        %v984 = vpop.f32.mrf.mxu0
        %v985 = vpop.f32.mrf.mxu0
        %v986 = vadd.f32 %v890, %v985
        %v987 = vpop.f32.mrf.mxu0
        %988 = vmatprep.mubr.bf16.mxu0 0
        %989 = vmatmul.mubr.bf16.gmra.mxu0 %v923
        %v990 = vpop.f32.mrf.mxu0
        %v991 = vadd.f32 %v890, %v990
        %v992 = vpop.f32.mrf.mxu0
        %v993 = vpop.f32.mrf.mxu0
        %v994 = vadd.f32 %v890, %v993
        %v995 = vpop.f32.mrf.mxu0
        %996 = vmatprep.mubr.bf16.mxu0 0
        %997 = vmatmul.mubr.bf16.gmra.mxu0 %v926
        %v998 = vpop.f32.mrf.mxu0
        %v999 = vadd.f32 %v890, %v998
        %v1000 = vpop.f32.mrf.mxu0
        %v1001 = vpop.f32.mrf.mxu0
        %v1002 = vadd.f32 %v890, %v1001
        %v1003 = vpop.f32.mrf.mxu0
        %1004 = vmatprep.mubr.bf16.mxu0 0
        %1005 = vmatmul.mubr.bf16.gmra.mxu0 %v929
        %v1006 = vpop.f32.mrf.mxu0
        %v1007 = vadd.f32 %v890, %v1006
        %v1008 = vpop.f32.mrf.mxu0
        %v1009 = vpop.f32.mrf.mxu0
        %v1010 = vadd.f32 %v890, %v1009
        %v1011 = vpop.f32.mrf.mxu0
        %1012 = vmatprep.mubr.bf16.mxu0 0
        %1013 = vmatmul.mubr.bf16.gmra.mxu0 %v932
        %v1014 = vpop.f32.mrf.mxu0
        %v1015 = vadd.f32 %v890, %v1014
        %v1016 = vpop.f32.mrf.mxu0
        %v1017 = vpop.f32.mrf.mxu0
        %v1018 = vadd.f32 %v890, %v1017
        %v1019 = vpop.f32.mrf.mxu0
        %1020 = vmatprep.mubr.bf16.mxu0 0
        %1021 = vmatmul.mubr.bf16.gmra.mxu0 %v935
        %v1022 = vpop.f32.mrf.mxu0
        %v1023 = vadd.f32 %v890, %v1022
        %v1024 = vpop.f32.mrf.mxu0
        %v1025 = vpop.f32.mrf.mxu0
        %v1026 = vadd.f32 %v890, %v1025
        %v1027 = vpop.f32.mrf.mxu0
        %1028 = vmatprep.mubr.bf16.mxu0 0
        %1029 = vmatmul.mubr.bf16.gmra.mxu0 %v938
        %v1030 = vpop.f32.mrf.mxu0
        %v1031 = vadd.f32 %v890, %v1030
        %v1032 = vpop.f32.mrf.mxu0
        %v1033 = vpop.f32.mrf.mxu0
        %v1034 = vadd.f32 %v890, %v1033
        %v1035 = vpop.f32.mrf.mxu0
        %1036 = vdwg.mxu0
        %v1037 = vmax.f32 %v975, 0.0
        %v1038 = vmax.f32 %v978, 0.0
        %v1039 = vmax.f32 %v983, 0.0
        %v1040 = vmax.f32 %v986, 0.0
        %v1041 = vmax.f32 %v991, 0.0
        %v1042 = vmax.f32 %v994, 0.0
        %v1043 = vmax.f32 %v999, 0.0
        %v1044 = vmax.f32 %v1002, 0.0
        %v1045 = vmax.f32 %v1007, 0.0
        %v1046 = vmax.f32 %v1010, 0.0
        %v1047 = vmax.f32 %v1015, 0.0
        %v1048 = vmax.f32 %v1018, 0.0
        %v1049 = vmax.f32 %v1023, 0.0
        %v1050 = vmax.f32 %v1026, 0.0
        %v1051 = vmax.f32 %v1031, 0.0
        %v1052 = vmax.f32 %v1034, 0.0
        %v1053 = vpack.c.bf16 %v1038, %v1037
        %v1054 = vpack.c.bf16 %v1040, %v1039
        %v1055 = vpack.c.bf16 %v1042, %v1041
        %v1056 = vpack.c.bf16 %v1044, %v1043
        %v1057 = vpack.c.bf16 %v1046, %v1045
        %v1058 = vpack.c.bf16 %v1048, %v1047
        %v1059 = vpack.c.bf16 %v1050, %v1049
        %v1060 = vpack.c.bf16 %v1052, %v1051
        %v1061 = vld [vmem:[%s5] sm:$0xff]
        %v1062 = vld [vmem:[%s5 + $0x8] sm:$0xf]
        %v1063 = vld [vmem:[%s5 + $0xc] sm:$0xff]
        %v1064 = vld [vmem:[%s5 + $0x14] sm:$0xf]
        %v1065 = vld [vmem:[%s5 + $0x18] sm:$0xff]
        %v1066 = vld [vmem:[%s5 + $0x20] sm:$0xf]
        %v1067 = vld [vmem:[%s5 + $0x24] sm:$0xff]
        %v1068 = vld [vmem:[%s5 + $0x2c] sm:$0xf]
        %v1069 = vld [vmem:[%s5 + $0x30] sm:$0xff]
        %v1070 = vld [vmem:[%s5 + $0x38] sm:$0xf]
        %v1071 = vld [vmem:[%s5 + $0x3c] sm:$0xff]
        %v1072 = vld [vmem:[%s5 + $0x44] sm:$0xf]
        %v1073 = vld [vmem:[%s5 + $0x48] sm:$0xff]
        %v1074 = vld [vmem:[%s5 + $0x50] sm:$0xf]
        %v1075 = vld [vmem:[%s5 + $0x54] sm:$0xff]
        %v1076 = vld [vmem:[%s5 + $0x5c] sm:$0xf]
        %v1077 = vld [vmem:[%s6] sm:$0x7]
        %v1078 = vunpack.c.l.bf16 %v1077
        %v1080 = vlaneseq
        %v1081 = vshrl.u32 %v1080, 7
        %v1082 = vsub.s32 0, %v1081
        %v1083 = vrot.slane %v1078, %v1082
        %v1084 = vlaneseq
        %v1085 = vshrl.u32 %v1084, 7
        %v1086 = vsub.s32 2, %v1085
        %v1087 = vrot.slane %v1078, %v1086
        %v1088 = vlaneseq
        %v1089 = vshrl.u32 %v1088, 7
        %v1090 = vsub.s32 4, %v1089
        %v1091 = vrot.slane %v1078, %v1090
        %v1095 = vlaneseq
        %v1096 = vshrl.u32 %v1095, 7
        %v1097 = vsub.s32 0, %v1096
        %v1098 = vrot.slane %v1083, %v1097
        %v1099 = vlaneseq
        %v1100 = vshrl.u32 %v1099, 7
        %v1101 = vsub.s32 0, %v1100
        %v1102 = vrot.slane %v1087, %v1101
        %v1103 = vlaneseq
        %v1104 = vshrl.u32 %v1103, 7
        %v1105 = vsub.s32 0, %v1104
        %v1106 = vrot.slane %v1091, %v1105
        %v1123 = vunpack.c.l.b16 %v1061
        %v1124 = vunpack.c.h.b16 %v1061
        %v1125 = vunpack.c.l.b16 %v1062
        %v1126 = vunpack.c.l.b16 %v1063
        %v1127 = vunpack.c.h.b16 %v1063
        %v1128 = vunpack.c.l.b16 %v1064
        %v1129 = vunpack.c.l.b16 %v1065
        %v1130 = vunpack.c.h.b16 %v1065
        %v1131 = vunpack.c.l.b16 %v1066
        %v1132 = vunpack.c.l.b16 %v1067
        %v1133 = vunpack.c.h.b16 %v1067
        %v1134 = vunpack.c.l.b16 %v1068
        %v1135 = vunpack.c.l.b16 %v1069
        %v1136 = vunpack.c.h.b16 %v1069
        %v1137 = vunpack.c.l.b16 %v1070
        %v1138 = vunpack.c.l.b16 %v1071
        %v1139 = vunpack.c.h.b16 %v1071
        %v1140 = vunpack.c.l.b16 %v1072
        %v1141 = vunpack.c.l.b16 %v1073
        %v1142 = vunpack.c.h.b16 %v1073
        %v1143 = vunpack.c.l.b16 %v1074
        %v1144 = vunpack.c.l.b16 %v1075
        %v1145 = vunpack.c.h.b16 %v1075
        %v1146 = vunpack.c.l.b16 %v1076
        %v1147 = vpack.c.b16 %v1126, %v1123
        %v1148 = vpack.c.b16 %v1127, %v1124
        %v1149 = vpack.c.b16 %v1128, %v1125
        %v1150 = vpack.c.b16 %v1132, %v1129
        %v1151 = vpack.c.b16 %v1133, %v1130
        %v1152 = vpack.c.b16 %v1134, %v1131
        %v1153 = vpack.c.b16 %v1138, %v1135
        %v1154 = vpack.c.b16 %v1139, %v1136
        %v1155 = vpack.c.b16 %v1140, %v1137
        %v1156 = vpack.c.b16 %v1144, %v1141
        %v1157 = vpack.c.b16 %v1145, %v1142
        %v1158 = vpack.c.b16 %v1146, %v1143
        %v1172 = vsel %vm915, %v1053, 0
        %v1175 = vsel %vm915, %v1054, 0
        %v1178 = vsel %vm915, %v1055, 0
        %v1181 = vsel %vm915, %v1056, 0
        %v1184 = vsel %vm915, %v1057, 0
        %v1187 = vsel %vm915, %v1058, 0
        %v1190 = vsel %vm915, %v1059, 0
        %v1193 = vsel %vm915, %v1060, 0
        %1195 = vmatprep.subr.bf16.mxu0 0
        %1196 = vmatpush1.bf16.msra.mxu0 0
        %1197 = vmatprep.subr.bf16.mxu0 0
        %1198 = vmatpush1.bf16.msra.mxu0 0
        %1199 = vmatprep.subr.bf16.mxu0 0
        %1200 = vmatpush1.bf16.msra.mxu0 0
        %1201 = vmatprep.subr.bf16.mxu0 0
        %1202 = vmatpush1.bf16.msra.mxu0 0
        %1203 = vmatprep.subr.bf16.mxu0 %v1157
        %1204 = vmatpush1.bf16.msra.mxu0 %v1156
        %1205 = vmatprep.subr.bf16.mxu0 %v1154
        %1206 = vmatpush1.bf16.msra.mxu0 %v1153
        %1207 = vmatprep.subr.bf16.mxu0 %v1151
        %1208 = vmatpush1.bf16.msra.mxu0 %v1150
        %1209 = vmatprep.subr.bf16.mxu0 %v1148
        %1210 = vmatpush1.bf16.msra.mxu0 %v1147
        %1211 = vmatprep.subr.bf16.mxu0 0
        %1212 = vmatpush2.bf16.msra.mxu0 0
        %1213 = vmatprep.subr.bf16.mxu0 0
        %1214 = vmatpush2.bf16.msra.mxu0 0
        %1215 = vmatprep.subr.bf16.mxu0 0
        %1216 = vmatpush2.bf16.msra.mxu0 0
        %1217 = vmatprep.subr.bf16.mxu0 0
        %1218 = vmatpush2.bf16.msra.mxu0 0
        %1219 = vmatprep.subr.bf16.mxu0 0
        %1220 = vmatpush2.bf16.msra.mxu0 0
        %1221 = vmatprep.subr.bf16.mxu0 0
        %1222 = vmatpush2.bf16.msra.mxu0 0
        %1223 = vmatprep.subr.bf16.mxu0 0
        %1224 = vmatpush2.bf16.msra.mxu0 0
        %1225 = vmatprep.subr.bf16.mxu0 0
        %1226 = vmatpush2.bf16.msra.mxu0 0
        %1227 = vmatprep.mubr.bf16.mxu0 0
        %1228 = vmatmul.mubr.bf16.gmra.mxu0 %v1172
        %v1229 = vpop.f32.mrf.mxu0
        %v1230 = vadd.f32 %v1098, %v1229
        %v1231 = vpop.f32.mrf.mxu0
        %v1232 = vadd.f32 %v1102, %v1231
        %v1233 = vpop.f32.mrf.mxu0
        %v1234 = vadd.f32 %v1098, %v1233
        %v1235 = vpop.f32.mrf.mxu0
        %v1236 = vadd.f32 %v1102, %v1235
        %1237 = vmatprep.mubr.bf16.mxu0 0
        %1238 = vmatmul.mubr.bf16.gmra.mxu0 %v1175
        %v1239 = vpop.f32.mrf.mxu0
        %v1240 = vadd.f32 %v1098, %v1239
        %v1241 = vpop.f32.mrf.mxu0
        %v1242 = vadd.f32 %v1102, %v1241
        %v1243 = vpop.f32.mrf.mxu0
        %v1244 = vadd.f32 %v1098, %v1243
        %v1245 = vpop.f32.mrf.mxu0
        %v1246 = vadd.f32 %v1102, %v1245
        %1247 = vmatprep.mubr.bf16.mxu0 0
        %1248 = vmatmul.mubr.bf16.gmra.mxu0 %v1178
        %v1249 = vpop.f32.mrf.mxu0
        %v1250 = vadd.f32 %v1098, %v1249
        %v1251 = vpop.f32.mrf.mxu0
        %v1252 = vadd.f32 %v1102, %v1251
        %v1253 = vpop.f32.mrf.mxu0
        %v1254 = vadd.f32 %v1098, %v1253
        %v1255 = vpop.f32.mrf.mxu0
        %v1256 = vadd.f32 %v1102, %v1255
        %1257 = vmatprep.mubr.bf16.mxu0 0
        %1258 = vmatmul.mubr.bf16.gmra.mxu0 %v1181
        %v1259 = vpop.f32.mrf.mxu0
        %v1260 = vadd.f32 %v1098, %v1259
        %v1261 = vpop.f32.mrf.mxu0
        %v1262 = vadd.f32 %v1102, %v1261
        %v1263 = vpop.f32.mrf.mxu0
        %v1264 = vadd.f32 %v1098, %v1263
        %v1265 = vpop.f32.mrf.mxu0
        %v1266 = vadd.f32 %v1102, %v1265
        %1267 = vmatprep.mubr.bf16.mxu0 0
        %1268 = vmatmul.mubr.bf16.gmra.mxu0 %v1184
        %v1269 = vpop.f32.mrf.mxu0
        %v1270 = vadd.f32 %v1098, %v1269
        %v1271 = vpop.f32.mrf.mxu0
        %v1272 = vadd.f32 %v1102, %v1271
        %v1273 = vpop.f32.mrf.mxu0
        %v1274 = vadd.f32 %v1098, %v1273
        %v1275 = vpop.f32.mrf.mxu0
        %v1276 = vadd.f32 %v1102, %v1275
        %1277 = vmatprep.mubr.bf16.mxu0 0
        %1278 = vmatmul.mubr.bf16.gmra.mxu0 %v1187
        %v1279 = vpop.f32.mrf.mxu0
        %v1280 = vadd.f32 %v1098, %v1279
        %v1281 = vpop.f32.mrf.mxu0
        %v1282 = vadd.f32 %v1102, %v1281
        %v1283 = vpop.f32.mrf.mxu0
        %v1284 = vadd.f32 %v1098, %v1283
        %v1285 = vpop.f32.mrf.mxu0
        %v1286 = vadd.f32 %v1102, %v1285
        %1287 = vmatprep.mubr.bf16.mxu0 0
        %1288 = vmatmul.mubr.bf16.gmra.mxu0 %v1190
        %v1289 = vpop.f32.mrf.mxu0
        %v1290 = vadd.f32 %v1098, %v1289
        %v1291 = vpop.f32.mrf.mxu0
        %v1292 = vadd.f32 %v1102, %v1291
        %v1293 = vpop.f32.mrf.mxu0
        %v1294 = vadd.f32 %v1098, %v1293
        %v1295 = vpop.f32.mrf.mxu0
        %v1296 = vadd.f32 %v1102, %v1295
        %1297 = vmatprep.mubr.bf16.mxu0 0
        %1298 = vmatmul.mubr.bf16.gmra.mxu0 %v1193
        %v1299 = vpop.f32.mrf.mxu0
        %v1300 = vadd.f32 %v1098, %v1299
        %v1301 = vpop.f32.mrf.mxu0
        %v1302 = vadd.f32 %v1102, %v1301
        %v1303 = vpop.f32.mrf.mxu0
        %v1304 = vadd.f32 %v1098, %v1303
        %v1305 = vpop.f32.mrf.mxu0
        %v1306 = vadd.f32 %v1102, %v1305
        %1307 = vdwg.mxu0
        %1308 = vmatprep.subr.bf16.mxu0 0
        %1309 = vmatpush1.bf16.msra.mxu0 0
        %1310 = vmatprep.subr.bf16.mxu0 0
        %1311 = vmatpush1.bf16.msra.mxu0 0
        %1312 = vmatprep.subr.bf16.mxu0 0
        %1313 = vmatpush1.bf16.msra.mxu0 0
        %1314 = vmatprep.subr.bf16.mxu0 0
        %1315 = vmatpush1.bf16.msra.mxu0 0
        %1316 = vmatprep.subr.bf16.mxu0 0
        %1317 = vmatpush1.bf16.msra.mxu0 %v1158
        %1318 = vmatprep.subr.bf16.mxu0 0
        %1319 = vmatpush1.bf16.msra.mxu0 %v1155
        %1320 = vmatprep.subr.bf16.mxu0 0
        %1321 = vmatpush1.bf16.msra.mxu0 %v1152
        %1322 = vmatprep.subr.bf16.mxu0 0
        %1323 = vmatpush1.bf16.msra.mxu0 %v1149
        %1324 = vmatprep.subr.bf16.mxu0 0
        %1325 = vmatpush2.bf16.msra.mxu0 0
        %1326 = vmatprep.subr.bf16.mxu0 0
        %1327 = vmatpush2.bf16.msra.mxu0 0
        %1328 = vmatprep.subr.bf16.mxu0 0
        %1329 = vmatpush2.bf16.msra.mxu0 0
        %1330 = vmatprep.subr.bf16.mxu0 0
        %1331 = vmatpush2.bf16.msra.mxu0 0
        %1332 = vmatprep.subr.bf16.mxu0 0
        %1333 = vmatpush2.bf16.msra.mxu0 0
        %1334 = vmatprep.subr.bf16.mxu0 0
        %1335 = vmatpush2.bf16.msra.mxu0 0
        %1336 = vmatprep.subr.bf16.mxu0 0
        %1337 = vmatpush2.bf16.msra.mxu0 0
        %1338 = vmatprep.subr.bf16.mxu0 0
        %1339 = vmatpush2.bf16.msra.mxu0 0
        %1340 = vmatprep.mubr.bf16.mxu0 0
        %1341 = vmatmul.mubr.bf16.gmra.mxu0 %v1172
        %v1342 = vpop.f32.mrf.mxu0
        %v1343 = vadd.f32 %v1106, %v1342
        %v1344 = vpop.f32.mrf.mxu0
        %v1345 = vpop.f32.mrf.mxu0
        %v1346 = vadd.f32 %v1106, %v1345
        %v1347 = vpop.f32.mrf.mxu0
        %1348 = vmatprep.mubr.bf16.mxu0 0
        %1349 = vmatmul.mubr.bf16.gmra.mxu0 %v1175
        %v1350 = vpop.f32.mrf.mxu0
        %v1351 = vadd.f32 %v1106, %v1350
        %v1352 = vpop.f32.mrf.mxu0
        %v1353 = vpop.f32.mrf.mxu0
        %v1354 = vadd.f32 %v1106, %v1353
        %v1355 = vpop.f32.mrf.mxu0
        %1356 = vmatprep.mubr.bf16.mxu0 0
        %1357 = vmatmul.mubr.bf16.gmra.mxu0 %v1178
        %v1358 = vpop.f32.mrf.mxu0
        %v1359 = vadd.f32 %v1106, %v1358
        %v1360 = vpop.f32.mrf.mxu0
        %v1361 = vpop.f32.mrf.mxu0
        %v1362 = vadd.f32 %v1106, %v1361
        %v1363 = vpop.f32.mrf.mxu0
        %1364 = vmatprep.mubr.bf16.mxu0 0
        %1365 = vmatmul.mubr.bf16.gmra.mxu0 %v1181
        %v1366 = vpop.f32.mrf.mxu0
        %v1367 = vadd.f32 %v1106, %v1366
        %v1368 = vpop.f32.mrf.mxu0
        %v1369 = vpop.f32.mrf.mxu0
        %v1370 = vadd.f32 %v1106, %v1369
        %v1371 = vpop.f32.mrf.mxu0
        %1372 = vmatprep.mubr.bf16.mxu0 0
        %1373 = vmatmul.mubr.bf16.gmra.mxu0 %v1184
        %v1374 = vpop.f32.mrf.mxu0
        %v1375 = vadd.f32 %v1106, %v1374
        %v1376 = vpop.f32.mrf.mxu0
        %v1377 = vpop.f32.mrf.mxu0
        %v1378 = vadd.f32 %v1106, %v1377
        %v1379 = vpop.f32.mrf.mxu0
        %1380 = vmatprep.mubr.bf16.mxu0 0
        %1381 = vmatmul.mubr.bf16.gmra.mxu0 %v1187
        %v1382 = vpop.f32.mrf.mxu0
        %v1383 = vadd.f32 %v1106, %v1382
        %v1384 = vpop.f32.mrf.mxu0
        %v1385 = vpop.f32.mrf.mxu0
        %v1386 = vadd.f32 %v1106, %v1385
        %v1387 = vpop.f32.mrf.mxu0
        %1388 = vmatprep.mubr.bf16.mxu0 0
        %1389 = vmatmul.mubr.bf16.gmra.mxu0 %v1190
        %v1390 = vpop.f32.mrf.mxu0
        %v1391 = vadd.f32 %v1106, %v1390
        %v1392 = vpop.f32.mrf.mxu0
        %v1393 = vpop.f32.mrf.mxu0
        %v1394 = vadd.f32 %v1106, %v1393
        %v1395 = vpop.f32.mrf.mxu0
        %1396 = vmatprep.mubr.bf16.mxu0 0
        %1397 = vmatmul.mubr.bf16.gmra.mxu0 %v1193
        %v1398 = vpop.f32.mrf.mxu0
        %v1399 = vadd.f32 %v1106, %v1398
        %v1400 = vpop.f32.mrf.mxu0
        %v1401 = vpop.f32.mrf.mxu0
        %v1402 = vadd.f32 %v1106, %v1401
        %v1403 = vpop.f32.mrf.mxu0
        %1404 = vdwg.mxu0
        %v1405 = vpack.c.bf16 %v1234, %v1230
        %v1406 = vpack.c.bf16 %v1236, %v1232
        %v1407 = vpack.c.bf16 %v1346, %v1343
        %v1408 = vpack.c.bf16 %v1244, %v1240
        %v1409 = vpack.c.bf16 %v1246, %v1242
        %v1410 = vpack.c.bf16 %v1354, %v1351
        %v1411 = vpack.c.bf16 %v1254, %v1250
        %v1412 = vpack.c.bf16 %v1256, %v1252
        %v1413 = vpack.c.bf16 %v1362, %v1359
        %v1414 = vpack.c.bf16 %v1264, %v1260
        %v1415 = vpack.c.bf16 %v1266, %v1262
        %v1416 = vpack.c.bf16 %v1370, %v1367
        %v1417 = vpack.c.bf16 %v1274, %v1270
        %v1418 = vpack.c.bf16 %v1276, %v1272
        %v1419 = vpack.c.bf16 %v1378, %v1375
        %v1420 = vpack.c.bf16 %v1284, %v1280
        %v1421 = vpack.c.bf16 %v1286, %v1282
        %v1422 = vpack.c.bf16 %v1386, %v1383
        %v1423 = vpack.c.bf16 %v1294, %v1290
        %v1424 = vpack.c.bf16 %v1296, %v1292
        %v1425 = vpack.c.bf16 %v1394, %v1391
        %v1426 = vpack.c.bf16 %v1304, %v1300
        %v1427 = vpack.c.bf16 %v1306, %v1302
        %v1428 = vpack.c.bf16 %v1402, %v1399
        %v1453 = vunpack.c.l.b16 %v1405
        %v1454 = vunpack.c.l.b16 %v1406
        %v1455 = vunpack.c.l.b16 %v1407
        %v1456 = vunpack.c.h.b16 %v1405
        %v1457 = vunpack.c.h.b16 %v1406
        %v1458 = vunpack.c.h.b16 %v1407
        %v1459 = vunpack.c.l.b16 %v1408
        %v1460 = vunpack.c.l.b16 %v1409
        %v1461 = vunpack.c.l.b16 %v1410
        %v1462 = vunpack.c.h.b16 %v1408
        %v1463 = vunpack.c.h.b16 %v1409
        %v1464 = vunpack.c.h.b16 %v1410
        %v1465 = vunpack.c.l.b16 %v1411
        %v1466 = vunpack.c.l.b16 %v1412
        %v1467 = vunpack.c.l.b16 %v1413
        %v1468 = vunpack.c.h.b16 %v1411
        %v1469 = vunpack.c.h.b16 %v1412
        %v1470 = vunpack.c.h.b16 %v1413
        %v1471 = vunpack.c.l.b16 %v1414
        %v1472 = vunpack.c.l.b16 %v1415
        %v1473 = vunpack.c.l.b16 %v1416
        %v1474 = vunpack.c.h.b16 %v1414
        %v1475 = vunpack.c.h.b16 %v1415
        %v1476 = vunpack.c.h.b16 %v1416
        %v1477 = vunpack.c.l.b16 %v1417
        %v1478 = vunpack.c.l.b16 %v1418
        %v1479 = vunpack.c.l.b16 %v1419
        %v1480 = vunpack.c.h.b16 %v1417
        %v1481 = vunpack.c.h.b16 %v1418
        %v1482 = vunpack.c.h.b16 %v1419
        %v1483 = vunpack.c.l.b16 %v1420
        %v1484 = vunpack.c.l.b16 %v1421
        %v1485 = vunpack.c.l.b16 %v1422
        %v1486 = vunpack.c.h.b16 %v1420
        %v1487 = vunpack.c.h.b16 %v1421
        %v1488 = vunpack.c.h.b16 %v1422
        %v1489 = vunpack.c.l.b16 %v1423
        %v1490 = vunpack.c.l.b16 %v1424
        %v1491 = vunpack.c.l.b16 %v1425
        %v1492 = vunpack.c.h.b16 %v1423
        %v1493 = vunpack.c.h.b16 %v1424
        %v1494 = vunpack.c.h.b16 %v1425
        %v1495 = vunpack.c.l.b16 %v1426
        %v1496 = vunpack.c.l.b16 %v1427
        %v1497 = vunpack.c.l.b16 %v1428
        %v1498 = vunpack.c.h.b16 %v1426
        %v1499 = vunpack.c.h.b16 %v1427
        %v1500 = vunpack.c.h.b16 %v1428
        %v1501 = vpack.c.b16 %v1454, %v1453
        %v1502 = vpack.c.b16 %v1455, %v1455
        %v1503 = vpack.c.b16 %v1457, %v1456
        %v1504 = vpack.c.b16 %v1458, %v1458
        %v1505 = vpack.c.b16 %v1460, %v1459
        %v1506 = vpack.c.b16 %v1461, %v1461
        %v1507 = vpack.c.b16 %v1463, %v1462
        %v1508 = vpack.c.b16 %v1464, %v1464
        %v1509 = vpack.c.b16 %v1466, %v1465
        %v1510 = vpack.c.b16 %v1467, %v1467
        %v1511 = vpack.c.b16 %v1469, %v1468
        %v1512 = vpack.c.b16 %v1470, %v1470
        %v1513 = vpack.c.b16 %v1472, %v1471
        %v1514 = vpack.c.b16 %v1473, %v1473
        %v1515 = vpack.c.b16 %v1475, %v1474
        %v1516 = vpack.c.b16 %v1476, %v1476
        %v1517 = vpack.c.b16 %v1478, %v1477
        %v1518 = vpack.c.b16 %v1479, %v1479
        %v1519 = vpack.c.b16 %v1481, %v1480
        %v1520 = vpack.c.b16 %v1482, %v1482
        %v1521 = vpack.c.b16 %v1484, %v1483
        %v1522 = vpack.c.b16 %v1485, %v1485
        %v1523 = vpack.c.b16 %v1487, %v1486
        %v1524 = vpack.c.b16 %v1488, %v1488
        %v1525 = vpack.c.b16 %v1490, %v1489
        %v1526 = vpack.c.b16 %v1491, %v1491
        %v1527 = vpack.c.b16 %v1493, %v1492
        %v1528 = vpack.c.b16 %v1494, %v1494
        %v1529 = vpack.c.b16 %v1496, %v1495
        %v1530 = vpack.c.b16 %v1497, %v1497
        %v1531 = vpack.c.b16 %v1499, %v1498
        %v1532 = vpack.c.b16 %v1500, %v1500
        %1565 = vst [vmem:[%s297] sm:$0xff] %v1501
        %1566 = vst [vmem:[%s297 + $0x8] sm:$0xf] %v1502
        %1567 = vst [vmem:[%s297 + $0xc] sm:$0xff] %v1503
        %1568 = vst [vmem:[%s297 + $0x14] sm:$0xf] %v1504
        %1569 = vst [vmem:[%s297 + $0x18] sm:$0xff] %v1505
        %1570 = vst [vmem:[%s297 + $0x20] sm:$0xf] %v1506
        %1571 = vst [vmem:[%s297 + $0x24] sm:$0xff] %v1507
        %1572 = vst [vmem:[%s297 + $0x2c] sm:$0xf] %v1508
        %1573 = vst [vmem:[%s297 + $0x30] sm:$0xff] %v1509
        %1574 = vst [vmem:[%s297 + $0x38] sm:$0xf] %v1510
        %1575 = vst [vmem:[%s297 + $0x3c] sm:$0xff] %v1511
        %1576 = vst [vmem:[%s297 + $0x44] sm:$0xf] %v1512
        %1577 = vst [vmem:[%s297 + $0x48] sm:$0xff] %v1513
        %1578 = vst [vmem:[%s297 + $0x50] sm:$0xf] %v1514
        %1579 = vst [vmem:[%s297 + $0x54] sm:$0xff] %v1515
        %1580 = vst [vmem:[%s297 + $0x5c] sm:$0xf] %v1516
        %1581 = vst [vmem:[%s297 + $0x60] sm:$0xff] %v1517
        %1582 = vst [vmem:[%s297 + $0x68] sm:$0xf] %v1518
        %1583 = vst [vmem:[%s297 + $0x6c] sm:$0xff] %v1519
        %1584 = vst [vmem:[%s297 + $0x74] sm:$0xf] %v1520
        %1585 = vst [vmem:[%s297 + $0x78] sm:$0xff] %v1521
        %1586 = vst [vmem:[%s297 + $0x80] sm:$0xf] %v1522
        %1587 = vst [vmem:[%s297 + $0x84] sm:$0xff] %v1523
        %1588 = vst [vmem:[%s297 + $0x8c] sm:$0xf] %v1524
        %1589 = vst [vmem:[%s297 + $0x90] sm:$0xff] %v1525
        %1590 = vst [vmem:[%s297 + $0x98] sm:$0xf] %v1526
        %1591 = vst [vmem:[%s297 + $0x9c] sm:$0xff] %v1527
        %1592 = vst [vmem:[%s297 + $0xa4] sm:$0xf] %v1528
        %1593 = vst [vmem:[%s297 + $0xa8] sm:$0xff] %v1529
        %1594 = vst [vmem:[%s297 + $0xb0] sm:$0xf] %v1530
        %1595 = vst [vmem:[%s297 + $0xb4] sm:$0xff] %v1531
        %1596 = vst [vmem:[%s297 + $0xbc] sm:$0xf] %v1532
        %s1597 = sand.u32 %s184, 1
        %s1598 = scalar_lea.sflag [#allocation4], %s1597
        %s1599 = sand.u32 %s184, 1
        %s1600 = smul.addr %s1599, 192
        %s1601 = scalar_lea.vmem [#allocation5], %s1600
        // Predicated region
        $region53: #{tpu_custom_call.1} parent=47 // pred_check
          %p1602 = pneg %p194
        $region54: #{tpu_custom_call.1} parent=47 // pred_check_branch
          %1604 = sbr.rel (%p1602) target = $region56
        $region55: #{tpu_custom_call.1} parent=47 // pred_region
          %s1605 = smul.u32 16, %s24
          %s1607 = ssub.s32 3072, 3072
          %1608 = vsyncadd %s1598, %s1607
          %s1609 = smul.addr %s1605, 3
          %s1610 = smul.addr %s1609, 64
          %s1611 = scalar_lea.hbm %s7, %s1610
          %s1612 = sshll.u32 %s1601, 4
          %s1613 = int_to_ptr.vmem [resolvable:$true] %s1612
          %1618 = dma.vmem_to_hbm [thread:$0]  %s1613, 3072, %s1611, %s1598, 192, 192, 12
        $region56: #{tpu_custom_call.1} parent=47 // pred_fallthru
          _
      $region48: #{tpu_custom_call.1} parent=5 // pred_fallthru
        _
      %p1619 = scmp.le.s32.totalorder 2, %s19
      // Predicated region
      $region57: #{tpu_custom_call.1} parent=5 // pred_check
        %p1620 = pneg %p1619
      $region58: #{tpu_custom_call.1} parent=5 // pred_check_branch
        %1622 = sbr.rel (%p1620) target = $region60
      $region59: #{tpu_custom_call.1} parent=5 // pred_region
        %s1623 = ssub.s32 %s19, 2
        // Predicated region
        $region61: #{tpu_custom_call.1} parent=59 // pred_check
          %p1624 = pneg %p200
        $region62: #{tpu_custom_call.1} parent=59 // pred_check_branch
          %1626 = sbr.rel (%p1624) target = $region64
        $region63: #{tpu_custom_call.1} parent=59 // pred_region
          %s1627 = sand.u32 %s185, 1
          %s1628 = scalar_lea.sflag [#allocation4], %s1627
          %s1629 = sand.u32 %s185, 1
          %s1630 = smul.addr %s1629, 192
          %s1631 = scalar_lea.vmem [#allocation5], %s1630
          %1632 = dma.done %s1628, 3072
        $region64: #{tpu_custom_call.1} parent=59 // pred_fallthru
          _
      $region60: #{tpu_custom_call.1} parent=5 // pred_fallthru
        _
    $region6: #{tpu_custom_call.1} parent=1 // loop_footer
      %s23 = sadd.s32 1, %s19
    $region7: #{tpu_custom_call.1} parent=1 // loop_footer_branch
      %18 = sbr.rel target = $region3
    $region8: #{tpu_custom_call.1} parent=1 // loop_exit
      _
    %1633 = vsyncpa [#allocation3], 1
    %s1634 = scalar_lea.sflag [#allocation3], 1
    %1635 = vsyncpa %s1634, 1
    %1636 = vsyncpa [#allocation4], 1
    %s1637 = scalar_lea.sflag [#allocation4], 1
    %1638 = vsyncpa %s1637, 1

</llo_original>
